<compile_context>
chip_gen: v5e
topology: v5e:2x2
jax: 0.10.0
libtpu: 0.0.40
codegen_flags: <defaults>
</compile_context>

<pallas_src>
import math
import functools

import jax
import jax.numpy as jnp
from jax.experimental import pallas as pl
from jax.experimental.pallas import tpu as pltpu

BN_EPS = 1e-5
LANE = 128


def _round_up(x, m):
    return ((x + m - 1) // m) * m


def make_quaternion_mul(kernel):
    """JAX port of the PyTorch make_quaternion_mul (plain-JAX glue)."""
    r, i, j, k = jnp.split(kernel, 4, axis=1)
    r2 = jnp.concatenate([r, -i, -j, -k], axis=0)
    i2 = jnp.concatenate([i, r, -k, j], axis=0)
    j2 = jnp.concatenate([j, k, r, -i], axis=0)
    k2 = jnp.concatenate([k, -j, i, r], axis=0)
    hamilton = jnp.concatenate([r2, i2, j2, k2], axis=1)
    assert kernel.shape[1] == hamilton.shape[1]
    return hamilton


# ------------------- pass 1: support = x @ hamilton -------------------
def _support_kernel(x_ref, h_ref, sup_ref):
    sup_ref[...] = jnp.dot(
        x_ref[...], h_ref[...], preferred_element_type=jnp.float32
    ).astype(sup_ref.dtype)


# ------------------- pass 2: out = adj @ support (+ BN partial moments) -------------------
def _adj_matmul_kernel(adj_ref, sup_ref, out_ref, sum_ref, sq_ref):
    k = pl.program_id(1)

    @pl.when(k == 0)
    def _():
        out_ref[...] = jnp.zeros_like(out_ref)

    # bf16 x bf16 -> f32 accumulation directly in the resident output block.
    out_ref[...] += jnp.dot(
        adj_ref[...], sup_ref[...], preferred_element_type=jnp.float32
    )

    @pl.when(k == pl.num_programs(1) - 1)
    def _():
        acc = out_ref[...]
        s = jnp.sum(acc, axis=0, keepdims=True)        # (1, F) per-feature sum
        q = jnp.sum(acc * acc, axis=0, keepdims=True)  # (1, F) per-feature sum of squares
        # Broadcast to an (8, F) block so the stats output keeps (8, 128)-friendly tiles.
        sum_ref[...] = jnp.broadcast_to(s, sum_ref.shape)
        sq_ref[...] = jnp.broadcast_to(q, sq_ref.shape)


# ------------------- pass 3: BN apply + tanh -------------------
def _bn_tanh_kernel(y_ref, scale_ref, shift_ref, o_ref):
    # y * (gamma * inv_std) + (beta - mean * gamma * inv_std), then tanh.  All f32.
    o_ref[...] = jnp.tanh(y_ref[...] * scale_ref[...] + shift_ref[...]).astype(o_ref.dtype)


@functools.partial(jax.jit, static_argnames=("tm", "tk"))
def qgnn_layer_v2_forward(x, adj, weight, gamma, beta, *, tm=256, tk=512):
    """x: (N, in_features) f32, adj: (N, N) f32 dense, weight: (in_features//4, out_features),
    gamma/beta: (out_features,) BatchNorm1d affine params."""
    n, in_features = x.shape
    out_features = weight.shape[1]
    assert weight.shape[0] * 4 == in_features, "in_features must be divisible by 4"
    assert tm % LANE == 0 and tk % LANE == 0, "tiles must be multiples of 128"

    hamilton = make_quaternion_mul(weight)  # (in_features, out_features), f32

    f_pad = _round_up(out_features, LANE)           # lane-dense output stores
    n_pad = _round_up(n, math.lcm(tm, tk))          # N divisible by both tile sizes
    num_i = n_pad // tm
    num_k = n_pad // tk

    # Zero padding: padded rows/cols produce exactly-zero outputs, so they contribute
    # nothing to the BN sums (we divide by the real N below).
    x_p = jnp.pad(x, ((0, n_pad - n), (0, 0))).astype(jnp.bfloat16)
    h_p = jnp.pad(hamilton, ((0, 0), (0, f_pad - out_features))).astype(jnp.bfloat16)
    adj_p = jnp.pad(adj, ((0, n_pad - n), (0, n_pad - n))).astype(jnp.bfloat16)
    gamma_p = jnp.pad(gamma.astype(jnp.float32), (0, f_pad - out_features),
                      constant_values=1.0)
    beta_p = jnp.pad(beta.astype(jnp.float32), (0, f_pad - out_features))

    vmem_limit = 32 * 1024 * 1024  # safe on v5e/v6e/v7x; actual usage is a few MiB

    # ---------- pass 1: support = x @ hamilton ----------
    support = pl.pallas_call(
        _support_kernel,
        out_shape=jax.ShapeDtypeStruct((n_pad, f_pad), jnp.bfloat16),
        grid=(num_i,),
        in_specs=[
            pl.BlockSpec((tm, in_features), lambda i: (i, 0)),
            pl.BlockSpec((in_features, f_pad), lambda i: (0, 0)),
        ],
        out_specs=pl.BlockSpec((tm, f_pad), lambda i: (i, 0)),
        compiler_params=pltpu.CompilerParams(
            dimension_semantics=("parallel",), vmem_limit_bytes=vmem_limit),
        cost_estimate=pl.CostEstimate(
            flops=2 * n_pad * in_features * f_pad,
            transcendentals=0,
            bytes_accessed=2 * n_pad * in_features + 2 * in_features * f_pad
                           + 2 * n_pad * f_pad),
    )(x_p, h_p)

    # ---------- pass 2: out = adj @ support, plus per-row-tile BN moments ----------
    out_p, sum_p, sq_p = pl.pallas_call(
        _adj_matmul_kernel,
        out_shape=(
            jax.ShapeDtypeStruct((n_pad, f_pad), jnp.float32),
            jax.ShapeDtypeStruct((num_i * 8, f_pad), jnp.float32),
            jax.ShapeDtypeStruct((num_i * 8, f_pad), jnp.float32),
        ),
        grid=(num_i, num_k),
        in_specs=[
            pl.BlockSpec((tm, tk), lambda i, k: (i, k)),       # adj tile
            pl.BlockSpec((tk, f_pad), lambda i, k: (k, 0)),    # support tile
        ],
        out_specs=(
            pl.BlockSpec((tm, f_pad), lambda i, k: (i, 0)),    # accumulator output
            pl.BlockSpec((8, f_pad), lambda i, k: (i, 0)),     # per-row-tile sums
            pl.BlockSpec((8, f_pad), lambda i, k: (i, 0)),     # per-row-tile sums of squares
        ),
        compiler_params=pltpu.CompilerParams(
            dimension_semantics=("parallel", "arbitrary"),
            vmem_limit_bytes=vmem_limit),
        cost_estimate=pl.CostEstimate(
            flops=2 * n_pad * n_pad * f_pad,
            transcendentals=0,
            bytes_accessed=2 * n_pad * n_pad + 2 * n_pad * f_pad + 4 * n_pad * f_pad),
    )(adj_p, support)

    # ---------- global (full-batch) BN statistics from the per-tile partials ----------
    col_sum = jnp.sum(sum_p.reshape(num_i, 8, f_pad)[:, 0, :], axis=0)
    col_sq = jnp.sum(sq_p.reshape(num_i, 8, f_pad)[:, 0, :], axis=0)
    mean = col_sum / n                                            # real N, not padded
    var = jnp.maximum(col_sq / n - mean * mean, 0.0)              # biased (training mode)
    inv_std = jax.lax.rsqrt(var + BN_EPS)
    scale = (gamma_p * inv_std).reshape(1, f_pad)
    shift = (beta_p - mean * gamma_p * inv_std).reshape(1, f_pad)

    # ---------- pass 3: BN apply + tanh ----------
    y = pl.pallas_call(
        _bn_tanh_kernel,
        out_shape=jax.ShapeDtypeStruct((n_pad, f_pad), jnp.float32),
        grid=(num_i,),
        in_specs=[
            pl.BlockSpec((tm, f_pad), lambda i: (i, 0)),
            pl.BlockSpec((1, f_pad), lambda i: (0, 0)),
            pl.BlockSpec((1, f_pad), lambda i: (0, 0)),
        ],
        out_specs=pl.BlockSpec((tm, f_pad), lambda i: (i, 0)),
        compiler_params=pltpu.CompilerParams(
            dimension_semantics=("parallel",), vmem_limit_bytes=vmem_limit),
        cost_estimate=pl.CostEstimate(
            flops=2 * n_pad * f_pad,
            transcendentals=n_pad * f_pad,
            bytes_accessed=8 * n_pad * f_pad),
    )(out_p, scale, shift)

    return y[:n, :out_features]


if __name__ == "__main__":
    # Small, quaternion-compatible shapes (in_features divisible by 4).
    N = 200
    IN_FEATURES = 16
    OUT_FEATURES = 32

    key = jax.random.PRNGKey(0)
    k_w, k_x, k_adj = jax.random.split(key, 3)

    # reset_parameters(): weight ~ U(-stdv, stdv), stdv = sqrt(6 / (in//4 + out))
    stdv = math.sqrt(6.0 / (IN_FEATURES // 4 + OUT_FEATURES))
    weight = jax.random.uniform(
        k_w, (IN_FEATURES // 4, OUT_FEATURES), minval=-stdv, maxval=stdv,
        dtype=jnp.float32)

    # BatchNorm1d affine params (default init: gamma=1, beta=0).
    gamma = jnp.ones((OUT_FEATURES,), dtype=jnp.float32)
    beta = jnp.zeros((OUT_FEATURES,), dtype=jnp.float32)

    # Node features + row-normalized dense adjacency with self loops.
    x = jax.random.normal(k_x, (N, IN_FEATURES), dtype=jnp.float32)
    adj_raw = (jax.random.uniform(k_adj, (N, N)) > 0.9).astype(jnp.float32)
    adj_raw = adj_raw + jnp.eye(N, dtype=jnp.float32)
    adj = adj_raw / jnp.sum(adj_raw, axis=1, keepdims=True)

    # Small tiles so this toy graph still exercises multi-tile row + reduction grids.
    out = qgnn_layer_v2_forward(x, adj, weight, gamma, beta, tm=128, tk=128)
    jax.block_until_ready(out)

    # Reference with the same bf16 matmul inputs / f32 accumulation + full-batch BN + tanh.
    hamilton = make_quaternion_mul(weight)
    sup_ref = jnp.dot(x.astype(jnp.bfloat16), hamilton.astype(jnp.bfloat16),
                      preferred_element_type=jnp.float32)
    out_ref = jnp.dot(adj.astype(jnp.bfloat16), sup_ref.astype(jnp.bfloat16),
                      preferred_element_type=jnp.float32)
    mean_ref = jnp.mean(out_ref, axis=0)
    var_ref = jnp.var(out_ref, axis=0)
    ref = jnp.tanh((out_ref - mean_ref) * jax.lax.rsqrt(var_ref + BN_EPS) * gamma + beta)

    assert out.shape == (N, OUT_FEATURES)
    assert bool(jnp.all(jnp.isfinite(out)))
    assert bool(jnp.allclose(out, ref, atol=2e-2, rtol=0.0)), \
        float(jnp.max(jnp.abs(out - ref)))
    print("KERNEL_OK")
</pallas_src>

<mosaic_0001>
module attributes {stable_mosaic.version = 11 : i64} {
  func.func @_support_kernel(%arg0: i32, %arg1: memref<128x16xbf16, #tpu.memory_space<vmem>>, %arg2: memref<16x128xbf16, #tpu.memory_space<vmem>>, %arg3: memref<128x128xbf16, #tpu.memory_space<vmem>>) attributes {dimension_semantics = [#tpu.dimension_semantics<parallel>], iteration_bounds = array<i64: 2>, scalar_prefetch = 0 : i64, scratch_operands = 0 : i64, tpu.core_type = #tpu.core_type<tc>, window_params = [{transform_indices = @transform_0, window_bounds = array<i64: 128, 16>}, {pipeline_mode = #tpu.pipeline_mode<synchronous>, transform_indices = @transform_1, window_bounds = array<i64: 16, 128>}, {transform_indices = @transform_2, window_bounds = array<i64: 128, 128>}]} {
    %c0 = arith.constant 0 : index
    %c0_0 = arith.constant 0 : index
    %0 = vector.load %arg1[%c0, %c0_0] : memref<128x16xbf16, #tpu.memory_space<vmem>>, vector<128x16xbf16>
    %c0_1 = arith.constant 0 : index
    %c0_2 = arith.constant 0 : index
    %1 = vector.load %arg2[%c0_1, %c0_2] : memref<16x128xbf16, #tpu.memory_space<vmem>>, vector<16x128xbf16>
    %cst = arith.constant dense<0.000000e+00> : vector<128x128xf32>
    %2 = tpu.matmul %0, %1, %cst {dimension_numbers = #tpu.dot_dimension_numbers<[1], [0], [0], [1], [0, 0, 1, 1], [], []>} : vector<128x16xbf16>, vector<16x128xbf16>, vector<128x128xf32> -> vector<128x128xf32>
    %3 = arith.truncf %2 : vector<128x128xf32> to vector<128x128xbf16>
    %c0_3 = arith.constant 0 : index
    %c0_4 = arith.constant 0 : index
    %4 = vector.load %arg3[%c0_3, %c0_4] : memref<128x128xbf16, #tpu.memory_space<vmem>>, vector<128x128xbf16>
    tpu.vector_store %arg3[%c0_3, %c0_4], %3 {strides = array<i32>} : memref<128x128xbf16, #tpu.memory_space<vmem>>, vector<128x128xbf16>,
    return
  }
  func.func @transform_0(%arg0: i32) -> (i32, i32) {
    %c0_i32 = arith.constant 0 : i32
    %c0_i32_0 = arith.constant 0 : i32
    return %arg0, %c0_i32 : i32, i32
  }
  func.func @transform_1(%arg0: i32) -> (i32, i32) {
    %c0_i32 = arith.constant 0 : i32
    %c0_i32_0 = arith.constant 0 : i32
    %c0_i32_1 = arith.constant 0 : i32
    return %c0_i32, %c0_i32_0 : i32, i32
  }
  func.func @transform_2(%arg0: i32) -> (i32, i32) {
    %c0_i32 = arith.constant 0 : i32
    %c0_i32_0 = arith.constant 0 : i32
    return %arg0, %c0_i32 : i32, i32
  }
}

module attributes {stable_mosaic.version = 11 : i64} {
  func.func @_adj_matmul_kernel(%arg0: i32, %arg1: i32, %arg2: memref<128x128xbf16, #tpu.memory_space<vmem>>, %arg3: memref<128x128xbf16, #tpu.memory_space<vmem>>, %arg4: memref<128x128xf32, #tpu.memory_space<vmem>>, %arg5: memref<8x128xf32, #tpu.memory_space<vmem>>, %arg6: memref<8x128xf32, #tpu.memory_space<vmem>>) attributes {dimension_semantics = [#tpu.dimension_semantics<parallel>, #tpu.dimension_semantics<arbitrary>], iteration_bounds = array<i64: 2, 2>, scalar_prefetch = 0 : i64, scratch_operands = 0 : i64, tpu.core_type = #tpu.core_type<tc>, window_params = [{transform_indices = @transform_0, window_bounds = array<i64: 128, 128>}, {transform_indices = @transform_1, window_bounds = array<i64: 128, 128>}, {transform_indices = @transform_2, window_bounds = array<i64: 128, 128>}, {transform_indices = @transform_3, window_bounds = array<i64: 8, 128>}, {transform_indices = @transform_4, window_bounds = array<i64: 8, 128>}]} {
    %c0_i32 = arith.constant 0 : i32
    %0 = arith.cmpi eq, %arg1, %c0_i32 : i32
    %1 = arith.extui %0 : i1 to i32
    %c0_i32_0 = arith.constant 0 : i32
    %2 = arith.cmpi ne, %1, %c0_i32_0 : i32
    scf.if %2 {
      %cst_9 = arith.constant 0.000000e+00 : f32
      %12 = vector.broadcast %cst_9 : f32 to vector<128x128xf32>
      %c0_10 = arith.constant 0 : index
      %c0_11 = arith.constant 0 : index
      %13 = vector.load %arg4[%c0_10, %c0_11] : memref<128x128xf32, #tpu.memory_space<vmem>>, vector<128x128xf32>
      tpu.vector_store %arg4[%c0_10, %c0_11], %12 {strides = array<i32>} : memref<128x128xf32, #tpu.memory_space<vmem>>, vector<128x128xf32>,
    } else {
    }
    %c0 = arith.constant 0 : index
    %c0_1 = arith.constant 0 : index
    %3 = vector.load %arg4[%c0, %c0_1] : memref<128x128xf32, #tpu.memory_space<vmem>>, vector<128x128xf32>
    %c0_2 = arith.constant 0 : index
    %c0_3 = arith.constant 0 : index
    %4 = vector.load %arg2[%c0_2, %c0_3] : memref<128x128xbf16, #tpu.memory_space<vmem>>, vector<128x128xbf16>
    %c0_4 = arith.constant 0 : index
    %c0_5 = arith.constant 0 : index
    %5 = vector.load %arg3[%c0_4, %c0_5] : memref<128x128xbf16, #tpu.memory_space<vmem>>, vector<128x128xbf16>
    %cst = arith.constant dense<0.000000e+00> : vector<128x128xf32>
    %6 = tpu.matmul %4, %5, %cst {dimension_numbers = #tpu.dot_dimension_numbers<[1], [0], [0], [1], [0, 0, 1, 1], [], []>} : vector<128x128xbf16>, vector<128x128xbf16>, vector<128x128xf32> -> vector<128x128xf32>
    %7 = arith.addf %3, %6 : vector<128x128xf32>
    %c0_6 = arith.constant 0 : index
    %c0_7 = arith.constant 0 : index
    %8 = vector.load %arg4[%c0_6, %c0_7] : memref<128x128xf32, #tpu.memory_space<vmem>>, vector<128x128xf32>
    tpu.vector_store %arg4[%c0_6, %c0_7], %7 {strides = array<i32>} : memref<128x128xf32, #tpu.memory_space<vmem>>, vector<128x128xf32>,
    %c1_i32 = arith.constant 1 : i32
    %9 = arith.cmpi eq, %arg1, %c1_i32 : i32
    %10 = arith.extui %9 : i1 to i32
    %c0_i32_8 = arith.constant 0 : i32
    %11 = arith.cmpi ne, %10, %c0_i32_8 : i32
    scf.if %11 {
      %c0_9 = arith.constant 0 : index
      %c0_10 = arith.constant 0 : index
      %12 = vector.load %arg4[%c0_9, %c0_10] : memref<128x128xf32, #tpu.memory_space<vmem>>, vector<128x128xf32>
      %cst_11 = arith.constant dense<0.000000e+00> : vector<128xf32>
      %13 = vector.multi_reduction <add>, %12, %cst_11 [0] : vector<128x128xf32> to vector<128xf32>
      %14 = vector.shape_cast %13 : vector<128xf32> to vector<1x128xf32>
      %15 = arith.mulf %12, %12 : vector<128x128xf32>
      %cst_12 = arith.constant dense<0.000000e+00> : vector<128xf32>
      %16 = vector.multi_reduction <add>, %15, %cst_12 [0] : vector<128x128xf32> to vector<128xf32>
      %17 = vector.shape_cast %16 : vector<128xf32> to vector<1x128xf32>
      %18 = vector.shape_cast %14 : vector<1x128xf32> to vector<1x128xf32>
      %19 = vector.broadcast %18 : vector<1x128xf32> to vector<8x128xf32>
      %c0_13 = arith.constant 0 : index
      %c0_14 = arith.constant 0 : index
      %20 = vector.load %arg5[%c0_13, %c0_14] : memref<8x128xf32, #tpu.memory_space<vmem>>, vector<8x128xf32>
      tpu.vector_store %arg5[%c0_13, %c0_14], %19 {strides = array<i32>} : memref<8x128xf32, #tpu.memory_space<vmem>>, vector<8x128xf32>,
      %21 = vector.shape_cast %17 : vector<1x128xf32> to vector<1x128xf32>
      %22 = vector.broadcast %21 : vector<1x128xf32> to vector<8x128xf32>
      %c0_15 = arith.constant 0 : index
      %c0_16 = arith.constant 0 : index
      %23 = vector.load %arg6[%c0_15, %c0_16] : memref<8x128xf32, #tpu.memory_space<vmem>>, vector<8x128xf32>
      tpu.vector_store %arg6[%c0_15, %c0_16], %22 {strides = array<i32>} : memref<8x128xf32, #tpu.memory_space<vmem>>, vector<8x128xf32>,
    } else {
    }
    return
  }
  func.func @transform_0(%arg0: i32, %arg1: i32) -> (i32, i32) {
    %c0_i32 = arith.constant 0 : i32
    return %arg0, %arg1 : i32, i32
  }
  func.func @transform_1(%arg0: i32, %arg1: i32) -> (i32, i32) {
    %c0_i32 = arith.constant 0 : i32
    %c0_i32_0 = arith.constant 0 : i32
    return %arg1, %c0_i32 : i32, i32
  }
  func.func @transform_2(%arg0: i32, %arg1: i32) -> (i32, i32) {
    %c0_i32 = arith.constant 0 : i32
    %c0_i32_0 = arith.constant 0 : i32
    return %arg0, %c0_i32 : i32, i32
  }
  func.func @transform_3(%arg0: i32, %arg1: i32) -> (i32, i32) {
    %c0_i32 = arith.constant 0 : i32
    %c0_i32_0 = arith.constant 0 : i32
    return %arg0, %c0_i32 : i32, i32
  }
  func.func @transform_4(%arg0: i32, %arg1: i32) -> (i32, i32) {
    %c0_i32 = arith.constant 0 : i32
    %c0_i32_0 = arith.constant 0 : i32
    return %arg0, %c0_i32 : i32, i32
  }
}

module attributes {stable_mosaic.version = 11 : i64} {
  func.func @_bn_tanh_kernel(%arg0: i32, %arg1: memref<128x128xf32, #tpu.memory_space<vmem>>, %arg2: memref<1x128xf32, #tpu.memory_space<vmem>>, %arg3: memref<1x128xf32, #tpu.memory_space<vmem>>, %arg4: memref<128x128xf32, #tpu.memory_space<vmem>>) attributes {dimension_semantics = [#tpu.dimension_semantics<parallel>], iteration_bounds = array<i64: 2>, scalar_prefetch = 0 : i64, scratch_operands = 0 : i64, tpu.core_type = #tpu.core_type<tc>, window_params = [{transform_indices = @transform_0, window_bounds = array<i64: 128, 128>}, {pipeline_mode = #tpu.pipeline_mode<synchronous>, transform_indices = @transform_1, window_bounds = array<i64: 1, 128>}, {pipeline_mode = #tpu.pipeline_mode<synchronous>, transform_indices = @transform_2, window_bounds = array<i64: 1, 128>}, {transform_indices = @transform_3, window_bounds = array<i64: 128, 128>}]} {
    %c0 = arith.constant 0 : index
    %c0_0 = arith.constant 0 : index
    %0 = vector.load %arg1[%c0, %c0_0] : memref<128x128xf32, #tpu.memory_space<vmem>>, vector<128x128xf32>
    %c0_1 = arith.constant 0 : index
    %c0_2 = arith.constant 0 : index
    %1 = vector.load %arg2[%c0_1, %c0_2] : memref<1x128xf32, #tpu.memory_space<vmem>>, vector<1x128xf32>
    %2 = vector.broadcast %1 : vector<1x128xf32> to vector<128x128xf32>
    %3 = arith.mulf %0, %2 : vector<128x128xf32>
    %c0_3 = arith.constant 0 : index
    %c0_4 = arith.constant 0 : index
    %4 = vector.load %arg3[%c0_3, %c0_4] : memref<1x128xf32, #tpu.memory_space<vmem>>, vector<1x128xf32>
    %5 = vector.broadcast %4 : vector<1x128xf32> to vector<128x128xf32>
    %6 = arith.addf %3, %5 : vector<128x128xf32>
    %7 = math.tanh %6 : vector<128x128xf32>
    %c0_5 = arith.constant 0 : index
    %c0_6 = arith.constant 0 : index
    %8 = vector.load %arg4[%c0_5, %c0_6] : memref<128x128xf32, #tpu.memory_space<vmem>>, vector<128x128xf32>
    tpu.vector_store %arg4[%c0_5, %c0_6], %7 {strides = array<i32>} : memref<128x128xf32, #tpu.memory_space<vmem>>, vector<128x128xf32>,
    return
  }
  func.func @transform_0(%arg0: i32) -> (i32, i32) {
    %c0_i32 = arith.constant 0 : i32
    %c0_i32_0 = arith.constant 0 : i32
    return %arg0, %c0_i32 : i32, i32
  }
  func.func @transform_1(%arg0: i32) -> (i32, i32) {
    %c0_i32 = arith.constant 0 : i32
    %c0_i32_0 = arith.constant 0 : i32
    %c0_i32_1 = arith.constant 0 : i32
    return %c0_i32, %c0_i32_0 : i32, i32
  }
  func.func @transform_2(%arg0: i32) -> (i32, i32) {
    %c0_i32 = arith.constant 0 : i32
    %c0_i32_0 = arith.constant 0 : i32
    %c0_i32_1 = arith.constant 0 : i32
    return %c0_i32, %c0_i32_0 : i32, i32
  }
  func.func @transform_3(%arg0: i32) -> (i32, i32) {
    %c0_i32 = arith.constant 0 : i32
    %c0_i32_0 = arith.constant 0 : i32
    return %arg0, %c0_i32 : i32, i32
  }
}

</mosaic_0001>

<llo_original>
// kernel: qgnn_layer_v2_forward.3
$region0: #{qgnn_layer_v2_forward.3}
  #allocation0 [shape = 'u32[]', space=smem, size = 0x4, offset = 0x4, fixed_abs, tag = 'smem constant byte address 0x4 - core index']
  #allocation1 [shape = 'u32[72,128]{1,0:T(1,128)}', space=vmem, size = 0x9000, scoped, tag = 'internal scratch']
  %s0 = inlined_call_operand.vmem [shape: bf16[256,16], index: 0, kind: input, shape index: {}]
  %s1 = inlined_call_operand.vmem [shape: bf16[16,128], index: 1, kind: input, shape index: {}]
  %s2 = inlined_call_operand.vmem [shape: bf16[256,128], index: 2, kind: output, shape index: {}]
  %s3 = sld [smem:[#allocation0]]
  $region41: #{qgnn_layer_v2_forward.3} parent=0
    _
  %s5 = ssub.s32 1, %s3
  %s6 = scalar_select 0, %s5, %s3
  loop: start=0, step=1, limit=4
  $region2: #{qgnn_layer_v2_forward.3} parent=0 // loop_pre_header
    _
  $region3: #{qgnn_layer_v2_forward.3} parent=0 // loop_header
    %s8 = sphi 0, %s12
    %p9 = scmp.ge.s32.totalorder %s8, 4
    %s18 = sphi 0, %s20
    %s21 = sphi 0, %s18
    %s22 = sphi 0, %s21
    %s38 = sphi 0, %s22
    %s42 = sphi 0, %s42
    %s44 = sphi 0, %s42
    %s45 = sphi 0, %s44
    %s59 = sphi 0, %s45
    %s65 = sphi 0, %s67
    %s68 = sphi 0, %s65
    %s69 = sphi 0, %s68
    %s85 = sphi 0, %s69
  $region4: #{qgnn_layer_v2_forward.3} parent=0 // loop_header_branch
    %11 = sbr.rel (%p9) target = $region8
  $region5: #{qgnn_layer_v2_forward.3} parent=0 // loop_body
    %s13 = ssub.s32 %s8, 1
    %s14 = ssub.s32 %s8, 2
    %s15 = sadd.s32 %s8, 1
    %s16 = ssub.s32 %s8, %s15
    %p17 = scmp.eq.s32.totalorder %s16, 0
    %s19 = sadd.s32 %s18, 1
    %s20 = scalar_select %p17, %s18, %s19
    %p23 = pneg %p17
    %p24 = scmp.eq.s32.totalorder %s8, 1
    %p25 = por %p23, %p24
    %p26 = scmp.ne.s32.totalorder %s18, %s21
    %p27 = scmp.eq.s32.totalorder %s8, 0
    %p28 = por %p26, %p27
    %p29 = scmp.ne.s32.totalorder %s18, %s21
    %p30 = scmp.eq.s32.totalorder %s13, 1
    %p31 = por %p29, %p30
    %p32 = scmp.ne.s32.totalorder %s21, %s22
    %p33 = scmp.eq.s32.totalorder %s13, 0
    %p34 = por %p32, %p33
    %p35 = scmp.ne.s32.totalorder %s21, %s22
    %p36 = scmp.eq.s32.totalorder %s14, 1
    %p37 = por %p35, %p36
    %p39 = scmp.ne.s32.totalorder %s22, %s38
    %p40 = scmp.eq.s32.totalorder %s14, 0
    %p41 = por %p39, %p40
    %s43 = sadd.s32 %s42, 1
    %p46 = scmp.eq.s32.totalorder %s8, 1
    %p47 = scmp.ne.s32.totalorder %s42, %s44
    %p48 = scmp.eq.s32.totalorder %s8, 0
    %p49 = por %p47, %p48
    %p50 = scmp.ne.s32.totalorder %s42, %s44
    %p51 = scmp.eq.s32.totalorder %s13, 1
    %p52 = por %p50, %p51
    %p53 = scmp.ne.s32.totalorder %s44, %s45
    %p54 = scmp.eq.s32.totalorder %s13, 0
    %p55 = por %p53, %p54
    %p56 = scmp.ne.s32.totalorder %s44, %s45
    %p57 = scmp.eq.s32.totalorder %s14, 1
    %p58 = por %p56, %p57
    %p60 = scmp.ne.s32.totalorder %s45, %s59
    %p61 = scmp.eq.s32.totalorder %s14, 0
    %p62 = por %p60, %p61
    %s63 = ssub.s32 %s8, %s15
    %p64 = scmp.eq.s32.totalorder %s63, 0
    %s66 = sadd.s32 %s65, 1
    %s67 = scalar_select %p64, %s65, %s66
    %p70 = pneg %p64
    %p71 = scmp.eq.s32.totalorder %s8, 1
    %p72 = por %p70, %p71
    %p73 = scmp.ne.s32.totalorder %s65, %s68
    %p74 = scmp.eq.s32.totalorder %s8, 0
    %p75 = por %p73, %p74
    %p76 = scmp.ne.s32.totalorder %s65, %s68
    %p77 = scmp.eq.s32.totalorder %s13, 1
    %p78 = por %p76, %p77
    %p79 = scmp.ne.s32.totalorder %s68, %s69
    %p80 = scmp.eq.s32.totalorder %s13, 0
    %p81 = por %p79, %p80
    %p82 = scmp.ne.s32.totalorder %s68, %s69
    %p83 = scmp.eq.s32.totalorder %s14, 1
    %p84 = por %p82, %p83
    %p86 = scmp.ne.s32.totalorder %s69, %s85
    %p87 = scmp.eq.s32.totalorder %s14, 0
    %p88 = por %p86, %p87
    %p89 = scmp.le.s32.totalorder 1, %s8
    %p90 = scmp.lt.s32.totalorder %s8, 3
    %p91 = pnand %p89, %p90
    %p92 = pneg %p91
    // Predicated region
    $region9: #{qgnn_layer_v2_forward.3} parent=5 // pred_check
      _
    $region10: #{qgnn_layer_v2_forward.3} parent=5 // pred_check_branch
      %94 = sbr.rel (%p91) target = $region12
    $region11: #{qgnn_layer_v2_forward.3} parent=5 // pred_region
      %s95 = ssub.s32 %s8, 1
      // Predicated region
      $region13: #{qgnn_layer_v2_forward.3} parent=11 // pred_check
        %p96 = pneg %p55
      $region14: #{qgnn_layer_v2_forward.3} parent=11 // pred_check_branch
        %98 = sbr.rel (%p96) target = $region16
      $region15: #{qgnn_layer_v2_forward.3} parent=11 // pred_region
        _
      $region16: #{qgnn_layer_v2_forward.3} parent=11 // pred_fallthru
        _
    $region12: #{qgnn_layer_v2_forward.3} parent=5 // pred_fallthru
      _
    %p99 = scmp.lt.s32.totalorder %s8, 2
    // Predicated region
    $region17: #{qgnn_layer_v2_forward.3} parent=5 // pred_check
      %p100 = pneg %p99
    $region18: #{qgnn_layer_v2_forward.3} parent=5 // pred_check_branch
      %102 = sbr.rel (%p100) target = $region20
    $region19: #{qgnn_layer_v2_forward.3} parent=5 // pred_region
      // Predicated region
      $region21: #{qgnn_layer_v2_forward.3} parent=19 // pred_check
        %p103 = pneg %p28
      $region22: #{qgnn_layer_v2_forward.3} parent=19 // pred_check_branch
        %105 = sbr.rel (%p103) target = $region24
      $region23: #{qgnn_layer_v2_forward.3} parent=19 // pred_region
        %s106 = smul.u32 16, %s8
        %p107 = scmp.lt.s32.totalorder %s106, 31
        %s108 = scalar_select %p107, %s106, 31
        %s109 = smul.addr %s108, 4
        %s110 = scalar_lea.vmem %s0, %s109
        %s111 = smul.u32 16, %s8
      $region24: #{qgnn_layer_v2_forward.3} parent=19 // pred_fallthru
        _
    $region20: #{qgnn_layer_v2_forward.3} parent=5 // pred_fallthru
      _
    %p112 = scmp.le.s32.totalorder 1, %s8
    %p113 = scmp.lt.s32.totalorder %s8, 3
    %p114 = pnand %p112, %p113
    %p115 = pneg %p114
    // Predicated region
    $region25: #{qgnn_layer_v2_forward.3} parent=5 // pred_check
      _
    $region26: #{qgnn_layer_v2_forward.3} parent=5 // pred_check_branch
      %117 = sbr.rel (%p114) target = $region28
    $region27: #{qgnn_layer_v2_forward.3} parent=5 // pred_region
      %s118 = ssub.s32 %s8, 1
      %s119 = smul.u32 16, %s13
      %p120 = scmp.lt.s32.totalorder %s119, 31
      %s121 = scalar_select %p120, %s119, 31
      %s122 = smul.addr %s121, 4
      %s123 = scalar_lea.vmem %s0, %s122
      %p124 = pneg %p34
      %p125 = pneg %p31
      %p126 = pneg %p55
      %p127 = pneg %p52
      %p128 = pneg %p81
      %p129 = pneg %p78
      %s130 = smul.u32 16, %s13
      %p131 = scmp.lt.s32.totalorder %s130, 31
      %s132 = scalar_select %p131, %s130, 31
      %s133 = smul.addr %s132, 4
      %s134 = scalar_lea.vmem %s2, %s133
      %s135 = smul.u32 16, %s13
      %p136 = scmp.lt.s32.totalorder %s135, 31
      %s137 = scalar_select %p136, %s135, 31
      %s138 = smul.addr %s137, 4
      %s139 = scalar_lea.vmem %s0, %s138
      %s140 = smul.u32 16, %s13
      %s141 = smul.u32 16, %s13
      %p142 = scmp.lt.s32.totalorder %s141, 31
      %s143 = scalar_select %p142, %s141, 31
      %s144 = smul.addr %s143, 4
      %s145 = scalar_lea.vmem %s2, %s144
      %s146 = smul.u32 16, %s13
      %v148 = vld [vmem:[%s139] sm:$0xf]
      %v149 = vld [vmem:[%s139 + $0x4] sm:$0xf]
      %v150 = vld [vmem:[%s139 + $0x8] sm:$0xf]
      %v151 = vld [vmem:[%s139 + $0xc] sm:$0xf]
      %v152 = vld [vmem:[%s139 + $0x10] sm:$0xf]
      %v153 = vld [vmem:[%s139 + $0x14] sm:$0xf]
      %v154 = vld [vmem:[%s139 + $0x18] sm:$0xf]
      %v155 = vld [vmem:[%s139 + $0x1c] sm:$0xf]
      %v156 = vld [vmem:[%s139 + $0x20] sm:$0xf]
      %v157 = vld [vmem:[%s139 + $0x24] sm:$0xf]
      %v158 = vld [vmem:[%s139 + $0x28] sm:$0xf]
      %v159 = vld [vmem:[%s139 + $0x2c] sm:$0xf]
      %v160 = vld [vmem:[%s139 + $0x30] sm:$0xf]
      %v161 = vld [vmem:[%s139 + $0x34] sm:$0xf]
      %v162 = vld [vmem:[%s139 + $0x38] sm:$0xf]
      %v163 = vld [vmem:[%s139 + $0x3c] sm:$0xf]
      %v164 = vld [vmem:[%s1] sm:$0xf]
      %v165 = vld [vmem:[%s1 + $0x4] sm:$0xf]
      %v182 = vunpack.c.l.b16 %v148
      %v183 = vunpack.c.l.b16 %v149
      %v184 = vunpack.c.l.b16 %v150
      %v185 = vunpack.c.l.b16 %v151
      %v186 = vunpack.c.l.b16 %v152
      %v187 = vunpack.c.l.b16 %v153
      %v188 = vunpack.c.l.b16 %v154
      %v189 = vunpack.c.l.b16 %v155
      %v190 = vunpack.c.l.b16 %v156
      %v191 = vunpack.c.l.b16 %v157
      %v192 = vunpack.c.l.b16 %v158
      %v193 = vunpack.c.l.b16 %v159
      %v194 = vunpack.c.l.b16 %v160
      %v195 = vunpack.c.l.b16 %v161
      %v196 = vunpack.c.l.b16 %v162
      %v197 = vunpack.c.l.b16 %v163
      %v198 = vpack.c.b16 %v183, %v182
      %v199 = vpack.c.b16 %v185, %v184
      %v200 = vpack.c.b16 %v187, %v186
      %v201 = vpack.c.b16 %v189, %v188
      %v202 = vpack.c.b16 %v191, %v190
      %v203 = vpack.c.b16 %v193, %v192
      %v204 = vpack.c.b16 %v195, %v194
      %v205 = vpack.c.b16 %v197, %v196
      %v208 = vunpack.c.l.b16 %v164
      %v209 = vunpack.c.l.b16 %v165
      %v210 = vpack.c.b16 %v209, %v208
      %vm212 = vcmask 130048
      %v214 = vsel %vm212, %v198, 0
      %v217 = vsel %vm212, %v199, 0
      %v220 = vsel %vm212, %v200, 0
      %v223 = vsel %vm212, %v201, 0
      %v226 = vsel %vm212, %v202, 0
      %v229 = vsel %vm212, %v203, 0
      %v232 = vsel %vm212, %v204, 0
      %v235 = vsel %vm212, %v205, 0
      %237 = vmatpush.bf16.msra.mxu0 0
      %238 = vmatpush.bf16.msra.mxu0 0
      %239 = vmatpush.bf16.msra.mxu0 0
      %240 = vmatpush.bf16.msra.mxu0 0
      %241 = vmatpush.bf16.msra.mxu0 0
      %242 = vmatpush.bf16.msra.mxu0 0
      %243 = vmatpush.bf16.msra.mxu0 0
      %244 = vmatpush.bf16.msra.mxu0 %v210
      %245 = vmatmul.bf16.gmra.mxu0 %v214
      %v246 = vpop.f32.mrf.mxu0
      %v247 = vadd.f32 0.0, %v246
      %v248 = vpop.f32.mrf.mxu0
      %v249 = vadd.f32 0.0, %v248
      %250 = vmatmul.bf16.gmra.mxu0 %v217
      %v251 = vpop.f32.mrf.mxu0
      %v252 = vadd.f32 0.0, %v251
      %v253 = vpop.f32.mrf.mxu0
      %v254 = vadd.f32 0.0, %v253
      %255 = vmatmul.bf16.gmra.mxu0 %v220
      %v256 = vpop.f32.mrf.mxu0
      %v257 = vadd.f32 0.0, %v256
      %v258 = vpop.f32.mrf.mxu0
      %v259 = vadd.f32 0.0, %v258
      %260 = vmatmul.bf16.gmra.mxu0 %v223
      %v261 = vpop.f32.mrf.mxu0
      %v262 = vadd.f32 0.0, %v261
      %v263 = vpop.f32.mrf.mxu0
      %v264 = vadd.f32 0.0, %v263
      %265 = vmatmul.bf16.gmra.mxu0 %v226
      %v266 = vpop.f32.mrf.mxu0
      %v267 = vadd.f32 0.0, %v266
      %v268 = vpop.f32.mrf.mxu0
      %v269 = vadd.f32 0.0, %v268
      %270 = vmatmul.bf16.gmra.mxu0 %v229
      %v271 = vpop.f32.mrf.mxu0
      %v272 = vadd.f32 0.0, %v271
      %v273 = vpop.f32.mrf.mxu0
      %v274 = vadd.f32 0.0, %v273
      %275 = vmatmul.bf16.gmra.mxu0 %v232
      %v276 = vpop.f32.mrf.mxu0
      %v277 = vadd.f32 0.0, %v276
      %v278 = vpop.f32.mrf.mxu0
      %v279 = vadd.f32 0.0, %v278
      %280 = vmatmul.bf16.gmra.mxu0 %v235
      %v281 = vpop.f32.mrf.mxu0
      %v282 = vadd.f32 0.0, %v281
      %v283 = vpop.f32.mrf.mxu0
      %v284 = vadd.f32 0.0, %v283
      %285 = vdwg.mxu0
      %v286 = vpack.c.bf16 %v247, %v247
      %v287 = vpack.c.bf16 %v249, %v249
      %v288 = vpack.c.bf16 %v252, %v252
      %v289 = vpack.c.bf16 %v254, %v254
      %v290 = vpack.c.bf16 %v257, %v257
      %v291 = vpack.c.bf16 %v259, %v259
      %v292 = vpack.c.bf16 %v262, %v262
      %v293 = vpack.c.bf16 %v264, %v264
      %v294 = vpack.c.bf16 %v267, %v267
      %v295 = vpack.c.bf16 %v269, %v269
      %v296 = vpack.c.bf16 %v272, %v272
      %v297 = vpack.c.bf16 %v274, %v274
      %v298 = vpack.c.bf16 %v277, %v277
      %v299 = vpack.c.bf16 %v279, %v279
      %v300 = vpack.c.bf16 %v282, %v282
      %v301 = vpack.c.bf16 %v284, %v284
      %302 = vst [vmem:[%s145] sm:$0xf] %v286
      %303 = vst [vmem:[%s145 + $0x4] sm:$0xf] %v287
      %304 = vst [vmem:[%s145 + $0x8] sm:$0xf] %v288
      %305 = vst [vmem:[%s145 + $0xc] sm:$0xf] %v289
      %306 = vst [vmem:[%s145 + $0x10] sm:$0xf] %v290
      %307 = vst [vmem:[%s145 + $0x14] sm:$0xf] %v291
      %308 = vst [vmem:[%s145 + $0x18] sm:$0xf] %v292
      %309 = vst [vmem:[%s145 + $0x1c] sm:$0xf] %v293
      %310 = vst [vmem:[%s145 + $0x20] sm:$0xf] %v294
      %311 = vst [vmem:[%s145 + $0x24] sm:$0xf] %v295
      %312 = vst [vmem:[%s145 + $0x28] sm:$0xf] %v296
      %313 = vst [vmem:[%s145 + $0x2c] sm:$0xf] %v297
      %314 = vst [vmem:[%s145 + $0x30] sm:$0xf] %v298
      %315 = vst [vmem:[%s145 + $0x34] sm:$0xf] %v299
      %316 = vst [vmem:[%s145 + $0x38] sm:$0xf] %v300
      %317 = vst [vmem:[%s145 + $0x3c] sm:$0xf] %v301
      %s318 = smul.u32 16, %s13
      %p319 = scmp.lt.s32.totalorder %s318, 31
      %s320 = scalar_select %p319, %s318, 31
      %s321 = smul.addr %s320, 4
      %s322 = scalar_lea.vmem %s2, %s321
      // Predicated region
      $region29: #{qgnn_layer_v2_forward.3} parent=27 // pred_check
        %p323 = pneg %p78
      $region30: #{qgnn_layer_v2_forward.3} parent=27 // pred_check_branch
        %325 = sbr.rel (%p323) target = $region32
      $region31: #{qgnn_layer_v2_forward.3} parent=27 // pred_region
        %s326 = smul.u32 16, %s13
      $region32: #{qgnn_layer_v2_forward.3} parent=27 // pred_fallthru
        _
    $region28: #{qgnn_layer_v2_forward.3} parent=5 // pred_fallthru
      _
    %p327 = scmp.le.s32.totalorder 2, %s8
    // Predicated region
    $region33: #{qgnn_layer_v2_forward.3} parent=5 // pred_check
      %p328 = pneg %p327
    $region34: #{qgnn_layer_v2_forward.3} parent=5 // pred_check_branch
      %330 = sbr.rel (%p328) target = $region36
    $region35: #{qgnn_layer_v2_forward.3} parent=5 // pred_region
      %s331 = ssub.s32 %s8, 2
      // Predicated region
      $region37: #{qgnn_layer_v2_forward.3} parent=35 // pred_check
        %p332 = pneg %p84
      $region38: #{qgnn_layer_v2_forward.3} parent=35 // pred_check_branch
        %334 = sbr.rel (%p332) target = $region40
      $region39: #{qgnn_layer_v2_forward.3} parent=35 // pred_region
        %s335 = smul.u32 16, %s14
        %p336 = scmp.lt.s32.totalorder %s335, 31
        %s337 = scalar_select %p336, %s335, 31
        %s338 = smul.addr %s337, 4
        %s339 = scalar_lea.vmem %s2, %s338
      $region40: #{qgnn_layer_v2_forward.3} parent=35 // pred_fallthru
        _
    $region36: #{qgnn_layer_v2_forward.3} parent=5 // pred_fallthru
      _
  $region6: #{qgnn_layer_v2_forward.3} parent=0 // loop_footer
    %s12 = sadd.s32 1, %s8
  $region7: #{qgnn_layer_v2_forward.3} parent=0 // loop_footer_branch
    %7 = sbr.rel target = $region3
  $region8: #{qgnn_layer_v2_forward.3} parent=0 // loop_exit
    _

// kernel: qgnn_layer_v2_forward.5
$region0: #{qgnn_layer_v2_forward.5}
  #allocation0 [shape = 'u32[]', space=smem, size = 0x4, offset = 0x4, fixed_abs, tag = 'smem constant byte address 0x4 - core index']
  #allocation1 [shape = 'u32[72,128]{1,0:T(1,128)}', space=vmem, size = 0x9000, scoped, tag = 'internal scratch']
  %s0 = inlined_call_operand.vmem [shape: f32[256,128], index: 0, kind: input, shape index: {}]
  %s1 = inlined_call_operand.vmem [shape: f32[1,128], index: 1, kind: input, shape index: {}]
  %s2 = inlined_call_operand.vmem [shape: f32[1,128], index: 2, kind: input, shape index: {}]
  %s3 = inlined_call_operand.vmem [shape: f32[256,128], index: 3, kind: output, shape index: {}]
  %s4 = sld [smem:[#allocation0]]
  $region45: #{qgnn_layer_v2_forward.5} parent=0
    _
  %s6 = ssub.s32 1, %s4
  %s7 = scalar_select 0, %s6, %s4
  loop: start=0, step=1, limit=4
  $region2: #{qgnn_layer_v2_forward.5} parent=0 // loop_pre_header
    _
  $region3: #{qgnn_layer_v2_forward.5} parent=0 // loop_header
    %s9 = sphi 0, %s13
    %p10 = scmp.ge.s32.totalorder %s9, 4
    %s19 = sphi 0, %s21
    %s22 = sphi 0, %s19
    %s23 = sphi 0, %s22
    %s39 = sphi 0, %s23
    %s43 = sphi 0, %s43
    %s45 = sphi 0, %s43
    %s46 = sphi 0, %s45
    %s60 = sphi 0, %s46
    %s64 = sphi 0, %s64
    %s66 = sphi 0, %s64
    %s67 = sphi 0, %s66
    %s81 = sphi 0, %s67
    %s87 = sphi 0, %s89
    %s90 = sphi 0, %s87
    %s91 = sphi 0, %s90
    %s107 = sphi 0, %s91
  $region4: #{qgnn_layer_v2_forward.5} parent=0 // loop_header_branch
    %12 = sbr.rel (%p10) target = $region8
  $region5: #{qgnn_layer_v2_forward.5} parent=0 // loop_body
    %s14 = ssub.s32 %s9, 1
    %s15 = ssub.s32 %s9, 2
    %s16 = sadd.s32 %s9, 1
    %s17 = ssub.s32 %s9, %s16
    %p18 = scmp.eq.s32.totalorder %s17, 0
    %s20 = sadd.s32 %s19, 1
    %s21 = scalar_select %p18, %s19, %s20
    %p24 = pneg %p18
    %p25 = scmp.eq.s32.totalorder %s9, 1
    %p26 = por %p24, %p25
    %p27 = scmp.ne.s32.totalorder %s19, %s22
    %p28 = scmp.eq.s32.totalorder %s9, 0
    %p29 = por %p27, %p28
    %p30 = scmp.ne.s32.totalorder %s19, %s22
    %p31 = scmp.eq.s32.totalorder %s14, 1
    %p32 = por %p30, %p31
    %p33 = scmp.ne.s32.totalorder %s22, %s23
    %p34 = scmp.eq.s32.totalorder %s14, 0
    %p35 = por %p33, %p34
    %p36 = scmp.ne.s32.totalorder %s22, %s23
    %p37 = scmp.eq.s32.totalorder %s15, 1
    %p38 = por %p36, %p37
    %p40 = scmp.ne.s32.totalorder %s23, %s39
    %p41 = scmp.eq.s32.totalorder %s15, 0
    %p42 = por %p40, %p41
    %s44 = sadd.s32 %s43, 1
    %p47 = scmp.eq.s32.totalorder %s9, 1
    %p48 = scmp.ne.s32.totalorder %s43, %s45
    %p49 = scmp.eq.s32.totalorder %s9, 0
    %p50 = por %p48, %p49
    %p51 = scmp.ne.s32.totalorder %s43, %s45
    %p52 = scmp.eq.s32.totalorder %s14, 1
    %p53 = por %p51, %p52
    %p54 = scmp.ne.s32.totalorder %s45, %s46
    %p55 = scmp.eq.s32.totalorder %s14, 0
    %p56 = por %p54, %p55
    %p57 = scmp.ne.s32.totalorder %s45, %s46
    %p58 = scmp.eq.s32.totalorder %s15, 1
    %p59 = por %p57, %p58
    %p61 = scmp.ne.s32.totalorder %s46, %s60
    %p62 = scmp.eq.s32.totalorder %s15, 0
    %p63 = por %p61, %p62
    %s65 = sadd.s32 %s64, 1
    %p68 = scmp.eq.s32.totalorder %s9, 1
    %p69 = scmp.ne.s32.totalorder %s64, %s66
    %p70 = scmp.eq.s32.totalorder %s9, 0
    %p71 = por %p69, %p70
    %p72 = scmp.ne.s32.totalorder %s64, %s66
    %p73 = scmp.eq.s32.totalorder %s14, 1
    %p74 = por %p72, %p73
    %p75 = scmp.ne.s32.totalorder %s66, %s67
    %p76 = scmp.eq.s32.totalorder %s14, 0
    %p77 = por %p75, %p76
    %p78 = scmp.ne.s32.totalorder %s66, %s67
    %p79 = scmp.eq.s32.totalorder %s15, 1
    %p80 = por %p78, %p79
    %p82 = scmp.ne.s32.totalorder %s67, %s81
    %p83 = scmp.eq.s32.totalorder %s15, 0
    %p84 = por %p82, %p83
    %s85 = ssub.s32 %s9, %s16
    %p86 = scmp.eq.s32.totalorder %s85, 0
    %s88 = sadd.s32 %s87, 1
    %s89 = scalar_select %p86, %s87, %s88
    %p92 = pneg %p86
    %p93 = scmp.eq.s32.totalorder %s9, 1
    %p94 = por %p92, %p93
    %p95 = scmp.ne.s32.totalorder %s87, %s90
    %p96 = scmp.eq.s32.totalorder %s9, 0
    %p97 = por %p95, %p96
    %p98 = scmp.ne.s32.totalorder %s87, %s90
    %p99 = scmp.eq.s32.totalorder %s14, 1
    %p100 = por %p98, %p99
    %p101 = scmp.ne.s32.totalorder %s90, %s91
    %p102 = scmp.eq.s32.totalorder %s14, 0
    %p103 = por %p101, %p102
    %p104 = scmp.ne.s32.totalorder %s90, %s91
    %p105 = scmp.eq.s32.totalorder %s15, 1
    %p106 = por %p104, %p105
    %p108 = scmp.ne.s32.totalorder %s91, %s107
    %p109 = scmp.eq.s32.totalorder %s15, 0
    %p110 = por %p108, %p109
    %p111 = scmp.le.s32.totalorder 1, %s9
    %p112 = scmp.lt.s32.totalorder %s9, 3
    %p113 = pnand %p111, %p112
    %p114 = pneg %p113
    // Predicated region
    $region9: #{qgnn_layer_v2_forward.5} parent=5 // pred_check
      _
    $region10: #{qgnn_layer_v2_forward.5} parent=5 // pred_check_branch
      %116 = sbr.rel (%p113) target = $region12
    $region11: #{qgnn_layer_v2_forward.5} parent=5 // pred_region
      %s117 = ssub.s32 %s9, 1
      // Predicated region
      $region13: #{qgnn_layer_v2_forward.5} parent=11 // pred_check
        %p118 = pneg %p56
      $region14: #{qgnn_layer_v2_forward.5} parent=11 // pred_check_branch
        %120 = sbr.rel (%p118) target = $region16
      $region15: #{qgnn_layer_v2_forward.5} parent=11 // pred_region
        _
      $region16: #{qgnn_layer_v2_forward.5} parent=11 // pred_fallthru
        _
      // Predicated region
      $region17: #{qgnn_layer_v2_forward.5} parent=11 // pred_check
        %p121 = pneg %p77
      $region18: #{qgnn_layer_v2_forward.5} parent=11 // pred_check_branch
        %123 = sbr.rel (%p121) target = $region20
      $region19: #{qgnn_layer_v2_forward.5} parent=11 // pred_region
        _
      $region20: #{qgnn_layer_v2_forward.5} parent=11 // pred_fallthru
        _
    $region12: #{qgnn_layer_v2_forward.5} parent=5 // pred_fallthru
      _
    %p124 = scmp.lt.s32.totalorder %s9, 2
    // Predicated region
    $region21: #{qgnn_layer_v2_forward.5} parent=5 // pred_check
      %p125 = pneg %p124
    $region22: #{qgnn_layer_v2_forward.5} parent=5 // pred_check_branch
      %127 = sbr.rel (%p125) target = $region24
    $region23: #{qgnn_layer_v2_forward.5} parent=5 // pred_region
      // Predicated region
      $region25: #{qgnn_layer_v2_forward.5} parent=23 // pred_check
        %p128 = pneg %p29
      $region26: #{qgnn_layer_v2_forward.5} parent=23 // pred_check_branch
        %130 = sbr.rel (%p128) target = $region28
      $region27: #{qgnn_layer_v2_forward.5} parent=23 // pred_region
        %s131 = smul.u32 16, %s9
        %p132 = scmp.lt.s32.totalorder %s131, 31
        %s133 = scalar_select %p132, %s131, 31
        %s134 = smul.addr %s133, 8
        %s135 = scalar_lea.vmem %s0, %s134
        %s136 = smul.u32 16, %s9
      $region28: #{qgnn_layer_v2_forward.5} parent=23 // pred_fallthru
        _
    $region24: #{qgnn_layer_v2_forward.5} parent=5 // pred_fallthru
      _
    %p137 = scmp.le.s32.totalorder 1, %s9
    %p138 = scmp.lt.s32.totalorder %s9, 3
    %p139 = pnand %p137, %p138
    %p140 = pneg %p139
    // Predicated region
    $region29: #{qgnn_layer_v2_forward.5} parent=5 // pred_check
      _
    $region30: #{qgnn_layer_v2_forward.5} parent=5 // pred_check_branch
      %142 = sbr.rel (%p139) target = $region32
    $region31: #{qgnn_layer_v2_forward.5} parent=5 // pred_region
      %s143 = ssub.s32 %s9, 1
      %s144 = smul.u32 16, %s14
      %p145 = scmp.lt.s32.totalorder %s144, 31
      %s146 = scalar_select %p145, %s144, 31
      %s147 = smul.addr %s146, 8
      %s148 = scalar_lea.vmem %s0, %s147
      %p149 = pneg %p35
      %p150 = pneg %p32
      %p151 = pneg %p56
      %p152 = pneg %p53
      %p153 = pneg %p77
      %p154 = pneg %p74
      %p155 = pneg %p103
      %p156 = pneg %p100
      %s157 = smul.u32 16, %s14
      %p158 = scmp.lt.s32.totalorder %s157, 31
      %s159 = scalar_select %p158, %s157, 31
      %s160 = smul.addr %s159, 8
      %s161 = scalar_lea.vmem %s3, %s160
      %s162 = smul.u32 16, %s14
      %p163 = scmp.lt.s32.totalorder %s162, 31
      %s164 = scalar_select %p163, %s162, 31
      %s165 = smul.addr %s164, 8
      %s166 = scalar_lea.vmem %s0, %s165
      %s167 = smul.u32 16, %s14
      %s168 = smul.u32 16, %s14
      %p169 = scmp.lt.s32.totalorder %s168, 31
      %s170 = scalar_select %p169, %s168, 31
      %s171 = smul.addr %s170, 8
      %s172 = scalar_lea.vmem %s3, %s171
      %s173 = smul.u32 16, %s14
      %v174 = vld [vmem:[%s166] sm:$0xff]
      %v175 = vld [vmem:[%s166 + $0x8] sm:$0xff]
      %v176 = vld [vmem:[%s166 + $0x10] sm:$0xff]
      %v177 = vld [vmem:[%s166 + $0x18] sm:$0xff]
      %v178 = vld [vmem:[%s166 + $0x20] sm:$0xff]
      %v179 = vld [vmem:[%s166 + $0x28] sm:$0xff]
      %v180 = vld [vmem:[%s166 + $0x30] sm:$0xff]
      %v181 = vld [vmem:[%s166 + $0x38] sm:$0xff]
      %v182 = vld [vmem:[%s166 + $0x40] sm:$0xff]
      %v183 = vld [vmem:[%s166 + $0x48] sm:$0xff]
      %v184 = vld [vmem:[%s166 + $0x50] sm:$0xff]
      %v185 = vld [vmem:[%s166 + $0x58] sm:$0xff]
      %v186 = vld [vmem:[%s166 + $0x60] sm:$0xff]
      %v187 = vld [vmem:[%s166 + $0x68] sm:$0xff]
      %v188 = vld [vmem:[%s166 + $0x70] sm:$0xff]
      %v189 = vld [vmem:[%s166 + $0x78] sm:$0xff]
      %v190 = vld [vmem:[%s1] sm:$0x1]
      %v192 = vperm.slane %v190, 0
      %v194 = vmul.f32 %v174, %v192
      %v195 = vmul.f32 %v175, %v192
      %v196 = vmul.f32 %v176, %v192
      %v197 = vmul.f32 %v177, %v192
      %v198 = vmul.f32 %v178, %v192
      %v199 = vmul.f32 %v179, %v192
      %v200 = vmul.f32 %v180, %v192
      %v201 = vmul.f32 %v181, %v192
      %v202 = vmul.f32 %v182, %v192
      %v203 = vmul.f32 %v183, %v192
      %v204 = vmul.f32 %v184, %v192
      %v205 = vmul.f32 %v185, %v192
      %v206 = vmul.f32 %v186, %v192
      %v207 = vmul.f32 %v187, %v192
      %v208 = vmul.f32 %v188, %v192
      %v209 = vmul.f32 %v189, %v192
      %v210 = vld [vmem:[%s2] sm:$0x1]
      %v212 = vperm.slane %v210, 0
      %v214 = vadd.f32 %v194, %v212
      %v215 = vadd.f32 %v195, %v212
      %v216 = vadd.f32 %v196, %v212
      %v217 = vadd.f32 %v197, %v212
      %v218 = vadd.f32 %v198, %v212
      %v219 = vadd.f32 %v199, %v212
      %v220 = vadd.f32 %v200, %v212
      %v221 = vadd.f32 %v201, %v212
      %v222 = vadd.f32 %v202, %v212
      %v223 = vadd.f32 %v203, %v212
      %v224 = vadd.f32 %v204, %v212
      %v225 = vadd.f32 %v205, %v212
      %v226 = vadd.f32 %v206, %v212
      %v227 = vadd.f32 %v207, %v212
      %v228 = vadd.f32 %v208, %v212
      %v229 = vadd.f32 %v209, %v212
      %v230 = vtanh.pop %v214
      %v231 = vtanh.pop %v215
      %v232 = vtanh.pop %v216
      %v233 = vtanh.pop %v217
      %v234 = vtanh.pop %v218
      %v235 = vtanh.pop %v219
      %v236 = vtanh.pop %v220
      %v237 = vtanh.pop %v221
      %v238 = vtanh.pop %v222
      %v239 = vtanh.pop %v223
      %v240 = vtanh.pop %v224
      %v241 = vtanh.pop %v225
      %v242 = vtanh.pop %v226
      %v243 = vtanh.pop %v227
      %v244 = vtanh.pop %v228
      %v245 = vtanh.pop %v229
      %246 = vst [vmem:[%s172] sm:$0xff] %v230
      %247 = vst [vmem:[%s172 + $0x8] sm:$0xff] %v231
      %248 = vst [vmem:[%s172 + $0x10] sm:$0xff] %v232
      %249 = vst [vmem:[%s172 + $0x18] sm:$0xff] %v233
      %250 = vst [vmem:[%s172 + $0x20] sm:$0xff] %v234
      %251 = vst [vmem:[%s172 + $0x28] sm:$0xff] %v235
      %252 = vst [vmem:[%s172 + $0x30] sm:$0xff] %v236
      %253 = vst [vmem:[%s172 + $0x38] sm:$0xff] %v237
      %254 = vst [vmem:[%s172 + $0x40] sm:$0xff] %v238
      %255 = vst [vmem:[%s172 + $0x48] sm:$0xff] %v239
      %256 = vst [vmem:[%s172 + $0x50] sm:$0xff] %v240
      %257 = vst [vmem:[%s172 + $0x58] sm:$0xff] %v241
      %258 = vst [vmem:[%s172 + $0x60] sm:$0xff] %v242
      %259 = vst [vmem:[%s172 + $0x68] sm:$0xff] %v243
      %260 = vst [vmem:[%s172 + $0x70] sm:$0xff] %v244
      %261 = vst [vmem:[%s172 + $0x78] sm:$0xff] %v245
      %s262 = smul.u32 16, %s14
      %p263 = scmp.lt.s32.totalorder %s262, 31
      %s264 = scalar_select %p263, %s262, 31
      %s265 = smul.addr %s264, 8
      %s266 = scalar_lea.vmem %s3, %s265
      // Predicated region
      $region33: #{qgnn_layer_v2_forward.5} parent=31 // pred_check
        %p267 = pneg %p100
      $region34: #{qgnn_layer_v2_forward.5} parent=31 // pred_check_branch
        %269 = sbr.rel (%p267) target = $region36
      $region35: #{qgnn_layer_v2_forward.5} parent=31 // pred_region
        %s270 = smul.u32 16, %s14
      $region36: #{qgnn_layer_v2_forward.5} parent=31 // pred_fallthru
        _
    $region32: #{qgnn_layer_v2_forward.5} parent=5 // pred_fallthru
      _
    %p271 = scmp.le.s32.totalorder 2, %s9
    // Predicated region
    $region37: #{qgnn_layer_v2_forward.5} parent=5 // pred_check
      %p272 = pneg %p271
    $region38: #{qgnn_layer_v2_forward.5} parent=5 // pred_check_branch
      %274 = sbr.rel (%p272) target = $region40
    $region39: #{qgnn_layer_v2_forward.5} parent=5 // pred_region
      %s275 = ssub.s32 %s9, 2
      // Predicated region
      $region41: #{qgnn_layer_v2_forward.5} parent=39 // pred_check
        %p276 = pneg %p106
      $region42: #{qgnn_layer_v2_forward.5} parent=39 // pred_check_branch
        %278 = sbr.rel (%p276) target = $region44
      $region43: #{qgnn_layer_v2_forward.5} parent=39 // pred_region
        %s279 = smul.u32 16, %s15
        %p280 = scmp.lt.s32.totalorder %s279, 31
        %s281 = scalar_select %p280, %s279, 31
        %s282 = smul.addr %s281, 8
        %s283 = scalar_lea.vmem %s3, %s282
      $region44: #{qgnn_layer_v2_forward.5} parent=39 // pred_fallthru
        _
    $region40: #{qgnn_layer_v2_forward.5} parent=5 // pred_fallthru
      _
  $region6: #{qgnn_layer_v2_forward.5} parent=0 // loop_footer
    %s13 = sadd.s32 1, %s9
  $region7: #{qgnn_layer_v2_forward.5} parent=0 // loop_footer_branch
    %8 = sbr.rel target = $region3
  $region8: #{qgnn_layer_v2_forward.5} parent=0 // loop_exit
    _

// kernel: qgnn_layer_v2_forward.4
$region0: #{qgnn_layer_v2_forward.4}
  #allocation0 [shape = 'u32[]', space=smem, size = 0x4, offset = 0x4, fixed_abs, tag = 'smem constant byte address 0x4 - core index']
  #allocation1 [shape = 'u32[72,128]{1,0:T(1,128)}', space=vmem, size = 0x9000, scoped, tag = 'internal scratch']
  %s0 = inlined_call_operand.vmem [shape: bf16[256,256], index: 0, kind: input, shape index: {}]
  %s1 = inlined_call_operand.vmem [shape: bf16[256,128], index: 1, kind: input, shape index: {}]
  %s2 = inlined_call_operand.vmem [shape: f32[256,128], index: 2, kind: output, shape index: {0}]
  %s3 = inlined_call_operand.vmem [shape: f32[16,128], index: 3, kind: output, shape index: {1}]
  %s4 = inlined_call_operand.vmem [shape: f32[16,128], index: 4, kind: output, shape index: {2}]
  %5 = xla_tuple %s2, %s3, %s4
  %s6 = sld [smem:[#allocation0]]
  $region106: #{qgnn_layer_v2_forward.4} parent=0
    _
  %s8 = ssub.s32 1, %s6
  %s9 = scalar_select 0, %s8, %s6
  $region1: #{qgnn_layer_v2_forward.4} parent=0
    #allocation2 [shape = 'u8[65536]{0}', space=vmem, size = 0x10000, scoped, tag = 'input window, operand 0']
    loop: start=0, step=1, limit=6
    $region2: #{qgnn_layer_v2_forward.4} parent=1 // loop_pre_header
      _
    $region3: #{qgnn_layer_v2_forward.4} parent=1 // loop_header
      %s11 = sphi 0, %s15
      %p12 = scmp.ge.s32.totalorder %s11, 6
      %s18 = sphi 0, %s30
      %s19 = sphi 0, %s26
      %s20 = sphi 0, %s18
      %s21 = sphi 0, %s19
      %s22 = sphi 0, %s20
      %s23 = sphi 0, %s21
      %s35 = sphi 0, %s37
      %s38 = sphi 0, %s35
      %s39 = sphi 0, %s38
      %s55 = sphi 0, %s39
      %s61 = sphi 0, %s63
      %s64 = sphi 0, %s61
      %s65 = sphi 0, %s64
      %s81 = sphi 0, %s65
      %s87 = sphi 0, %s89
      %s90 = sphi 0, %s87
      %s91 = sphi 0, %s90
      %s107 = sphi 0, %s91
      %s113 = sphi 0, %s115
      %s116 = sphi 0, %s113
      %s117 = sphi 0, %s116
      %s133 = sphi 0, %s117
      %s139 = sphi 0, %s141
      %s142 = sphi 0, %s139
      %s143 = sphi 0, %s142
      %s159 = sphi 0, %s143
    $region4: #{qgnn_layer_v2_forward.4} parent=1 // loop_header_branch
      %14 = sbr.rel (%p12) target = $region8
    $region5: #{qgnn_layer_v2_forward.4} parent=1 // loop_body
      %s16 = ssub.s32 %s11, 1
      %s17 = ssub.s32 %s11, 2
      %s24 = sadd.s32 1, %s19
      %p25 = scmp.ge.s32.totalorder %s24, 2
      %s26 = scalar_select %p25, 0, %s24
      %s27 = sadd.s32 1, %s18
      %s28 = scalar_select %p25, %s27, %s18
      %p29 = scmp.ge.s32.totalorder %s28, 2
      %s30 = scalar_select %p29, 0, %s28
      %s31 = ssub.s32 %s18, %s30
      %s32 = ssub.s32 %s19, %s26
      %s33 = sor.u32 %s31, %s32
      %p34 = scmp.eq.s32.totalorder %s33, 0
      %s36 = sadd.s32 %s35, 1
      %s37 = scalar_select %p34, %s35, %s36
      %p40 = pneg %p34
      %p41 = scmp.eq.s32.totalorder %s11, 3
      %p42 = por %p40, %p41
      %p43 = scmp.ne.s32.totalorder %s35, %s38
      %p44 = scmp.eq.s32.totalorder %s11, 0
      %p45 = por %p43, %p44
      %p46 = scmp.ne.s32.totalorder %s35, %s38
      %p47 = scmp.eq.s32.totalorder %s16, 3
      %p48 = por %p46, %p47
      %p49 = scmp.ne.s32.totalorder %s38, %s39
      %p50 = scmp.eq.s32.totalorder %s16, 0
      %p51 = por %p49, %p50
      %p52 = scmp.ne.s32.totalorder %s38, %s39
      %p53 = scmp.eq.s32.totalorder %s17, 3
      %p54 = por %p52, %p53
      %p56 = scmp.ne.s32.totalorder %s39, %s55
      %p57 = scmp.eq.s32.totalorder %s17, 0
      %p58 = por %p56, %p57
      %s59 = ssub.s32 %s19, %s26
      %p60 = scmp.eq.s32.totalorder %s59, 0
      %s62 = sadd.s32 %s61, 1
      %s63 = scalar_select %p60, %s61, %s62
      %p66 = pneg %p60
      %p67 = scmp.eq.s32.totalorder %s11, 3
      %p68 = por %p66, %p67
      %p69 = scmp.ne.s32.totalorder %s61, %s64
      %p70 = scmp.eq.s32.totalorder %s11, 0
      %p71 = por %p69, %p70
      %p72 = scmp.ne.s32.totalorder %s61, %s64
      %p73 = scmp.eq.s32.totalorder %s16, 3
      %p74 = por %p72, %p73
      %p75 = scmp.ne.s32.totalorder %s64, %s65
      %p76 = scmp.eq.s32.totalorder %s16, 0
      %p77 = por %p75, %p76
      %p78 = scmp.ne.s32.totalorder %s64, %s65
      %p79 = scmp.eq.s32.totalorder %s17, 3
      %p80 = por %p78, %p79
      %p82 = scmp.ne.s32.totalorder %s65, %s81
      %p83 = scmp.eq.s32.totalorder %s17, 0
      %p84 = por %p82, %p83
      %s85 = ssub.s32 %s18, %s30
      %p86 = scmp.eq.s32.totalorder %s85, 0
      %s88 = sadd.s32 %s87, 1
      %s89 = scalar_select %p86, %s87, %s88
      %p92 = pneg %p86
      %p93 = scmp.eq.s32.totalorder %s11, 3
      %p94 = por %p92, %p93
      %p95 = scmp.ne.s32.totalorder %s87, %s90
      %p96 = scmp.eq.s32.totalorder %s11, 0
      %p97 = por %p95, %p96
      %p98 = scmp.ne.s32.totalorder %s87, %s90
      %p99 = scmp.eq.s32.totalorder %s16, 3
      %p100 = por %p98, %p99
      %p101 = scmp.ne.s32.totalorder %s90, %s91
      %p102 = scmp.eq.s32.totalorder %s16, 0
      %p103 = por %p101, %p102
      %p104 = scmp.ne.s32.totalorder %s90, %s91
      %p105 = scmp.eq.s32.totalorder %s17, 3
      %p106 = por %p104, %p105
      %p108 = scmp.ne.s32.totalorder %s91, %s107
      %p109 = scmp.eq.s32.totalorder %s17, 0
      %p110 = por %p108, %p109
      %s111 = ssub.s32 %s18, %s30
      %p112 = scmp.eq.s32.totalorder %s111, 0
      %s114 = sadd.s32 %s113, 1
      %s115 = scalar_select %p112, %s113, %s114
      %p118 = pneg %p112
      %p119 = scmp.eq.s32.totalorder %s11, 3
      %p120 = por %p118, %p119
      %p121 = scmp.ne.s32.totalorder %s113, %s116
      %p122 = scmp.eq.s32.totalorder %s11, 0
      %p123 = por %p121, %p122
      %p124 = scmp.ne.s32.totalorder %s113, %s116
      %p125 = scmp.eq.s32.totalorder %s16, 3
      %p126 = por %p124, %p125
      %p127 = scmp.ne.s32.totalorder %s116, %s117
      %p128 = scmp.eq.s32.totalorder %s16, 0
      %p129 = por %p127, %p128
      %p130 = scmp.ne.s32.totalorder %s116, %s117
      %p131 = scmp.eq.s32.totalorder %s17, 3
      %p132 = por %p130, %p131
      %p134 = scmp.ne.s32.totalorder %s117, %s133
      %p135 = scmp.eq.s32.totalorder %s17, 0
      %p136 = por %p134, %p135
      %s137 = ssub.s32 %s18, %s30
      %p138 = scmp.eq.s32.totalorder %s137, 0
      %s140 = sadd.s32 %s139, 1
      %s141 = scalar_select %p138, %s139, %s140
      %p144 = pneg %p138
      %p145 = scmp.eq.s32.totalorder %s11, 3
      %p146 = por %p144, %p145
      %p147 = scmp.ne.s32.totalorder %s139, %s142
      %p148 = scmp.eq.s32.totalorder %s11, 0
      %p149 = por %p147, %p148
      %p150 = scmp.ne.s32.totalorder %s139, %s142
      %p151 = scmp.eq.s32.totalorder %s16, 3
      %p152 = por %p150, %p151
      %p153 = scmp.ne.s32.totalorder %s142, %s143
      %p154 = scmp.eq.s32.totalorder %s16, 0
      %p155 = por %p153, %p154
      %p156 = scmp.ne.s32.totalorder %s142, %s143
      %p157 = scmp.eq.s32.totalorder %s17, 3
      %p158 = por %p156, %p157
      %p160 = scmp.ne.s32.totalorder %s143, %s159
      %p161 = scmp.eq.s32.totalorder %s17, 0
      %p162 = por %p160, %p161
      %p163 = scmp.le.s32.totalorder 1, %s11
      %p164 = scmp.lt.s32.totalorder %s11, 5
      %p165 = pnand %p163, %p164
      %p166 = pneg %p165
      // Predicated region
      $region9: #{qgnn_layer_v2_forward.4} parent=5 // pred_check
        _
      $region10: #{qgnn_layer_v2_forward.4} parent=5 // pred_check_branch
        %168 = sbr.rel (%p165) target = $region12
      $region11: #{qgnn_layer_v2_forward.4} parent=5 // pred_region
        %s169 = ssub.s32 %s11, 1
      $region12: #{qgnn_layer_v2_forward.4} parent=5 // pred_fallthru
        _
      %p170 = scmp.lt.s32.totalorder %s11, 4
      // Predicated region
      $region13: #{qgnn_layer_v2_forward.4} parent=5 // pred_check
        %p171 = pneg %p170
      $region14: #{qgnn_layer_v2_forward.4} parent=5 // pred_check_branch
        %173 = sbr.rel (%p171) target = $region16
      $region15: #{qgnn_layer_v2_forward.4} parent=5 // pred_region
        // Predicated region
        $region17: #{qgnn_layer_v2_forward.4} parent=15 // pred_check
          %p174 = pneg %p45
        $region18: #{qgnn_layer_v2_forward.4} parent=15 // pred_check_branch
          %176 = sbr.rel (%p174) target = $region20
        $region19: #{qgnn_layer_v2_forward.4} parent=15 // pred_region
          %s177 = sand.u32 %s35, 1
          %s178 = sand.u32 %s35, 1
          %s179 = smul.addr %s178, 64
          %s180 = scalar_lea.vmem [#allocation2], %s179
          %s181 = smul.u32 16, %s18
          %s182 = smul.addr %s181, 2
          %s183 = sadd.s32 %s19, %s182
          %s184 = smul.addr %s183, 4
          %s185 = scalar_lea.vmem %s0, %s184
          // Predicated region
          $region21: #{qgnn_layer_v2_forward.4} parent=19 // pred_check
            _
          $region22: #{qgnn_layer_v2_forward.4} parent=19 // pred_check_branch
            %187 = sbr.rel (0) target = $region24
          $region23: #{qgnn_layer_v2_forward.4} parent=19 // pred_region
            // Predicated region
            $region25: #{qgnn_layer_v2_forward.4} parent=23 // pred_check
              _
            $region26: #{qgnn_layer_v2_forward.4} parent=23 // pred_check_branch
              %189 = sbr.rel target = $region28
            $region27: #{qgnn_layer_v2_forward.4} parent=23 // pred_region
              // Predicated region
              $region40: #{qgnn_layer_v2_forward.4} parent=27 // pred_check
                _
              $region41: #{qgnn_layer_v2_forward.4} parent=27 // pred_check_branch
                %235 = sbr.rel (0) target = $region43
              $region42: #{qgnn_layer_v2_forward.4} parent=27 // pred_region
                loop: start=0, step=1, limit=1
                $region44: #{qgnn_layer_v2_forward.4} parent=42 // loop_pre_header
                  _
                $region45: #{qgnn_layer_v2_forward.4} parent=42 // loop_header
                  %s237 = sphi 0, %s241
                  %p238 = scmp.ge.s32.totalorder %s237, 1
                  %s242 = sphi %s185, %s185
                  %s243 = sphi %s180, %s180
                $region46: #{qgnn_layer_v2_forward.4} parent=42 // loop_header_branch
                  %240 = sbr.rel (%p238) target = $region50
                $region47: #{qgnn_layer_v2_forward.4} parent=42 // loop_body
                  _
                $region48: #{qgnn_layer_v2_forward.4} parent=42 // loop_footer
                  %s241 = sadd.s32 1, %s237
                $region49: #{qgnn_layer_v2_forward.4} parent=42 // loop_footer_branch
                  %236 = sbr.rel target = $region45
                $region50: #{qgnn_layer_v2_forward.4} parent=42 // loop_exit
                  _
                %s245 = ssub.s32 16, 1
                loop: start=0, step=1, limit=1
                $region51: #{qgnn_layer_v2_forward.4} parent=42 // loop_pre_header
                  _
                $region52: #{qgnn_layer_v2_forward.4} parent=42 // loop_header
                  %s247 = sphi 0, %s251
                  %p248 = scmp.ge.s32.totalorder %s247, 1
                  %s252 = sphi %s185, %s185
                  %s253 = sphi %s180, %s180
                $region53: #{qgnn_layer_v2_forward.4} parent=42 // loop_header_branch
                  %250 = sbr.rel (%p248) target = $region57
                $region54: #{qgnn_layer_v2_forward.4} parent=42 // loop_body
                  %v254 = vld [vmem:[%s252] sm:%s245]
                  %255 = vst [vmem:[%s253] sm:%s245] %v254
                  %v256 = vld [vmem:[%s252 + $0x8] sm:%s245]
                  %257 = vst [vmem:[%s253 + $0x4] sm:%s245] %v256
                  %v258 = vld [vmem:[%s252 + $0x10] sm:%s245]
                  %259 = vst [vmem:[%s253 + $0x8] sm:%s245] %v258
                  %v260 = vld [vmem:[%s252 + $0x18] sm:%s245]
                  %261 = vst [vmem:[%s253 + $0xc] sm:%s245] %v260
                  %v262 = vld [vmem:[%s252 + $0x20] sm:%s245]
                  %263 = vst [vmem:[%s253 + $0x10] sm:%s245] %v262
                  %v264 = vld [vmem:[%s252 + $0x28] sm:%s245]
                  %265 = vst [vmem:[%s253 + $0x14] sm:%s245] %v264
                  %v266 = vld [vmem:[%s252 + $0x30] sm:%s245]
                  %267 = vst [vmem:[%s253 + $0x18] sm:%s245] %v266
                  %v268 = vld [vmem:[%s252 + $0x38] sm:%s245]
                  %269 = vst [vmem:[%s253 + $0x1c] sm:%s245] %v268
                  %v270 = vld [vmem:[%s252 + $0x40] sm:%s245]
                  %271 = vst [vmem:[%s253 + $0x20] sm:%s245] %v270
                  %v272 = vld [vmem:[%s252 + $0x48] sm:%s245]
                  %273 = vst [vmem:[%s253 + $0x24] sm:%s245] %v272
                  %v274 = vld [vmem:[%s252 + $0x50] sm:%s245]
                  %275 = vst [vmem:[%s253 + $0x28] sm:%s245] %v274
                  %v276 = vld [vmem:[%s252 + $0x58] sm:%s245]
                  %277 = vst [vmem:[%s253 + $0x2c] sm:%s245] %v276
                  %v278 = vld [vmem:[%s252 + $0x60] sm:%s245]
                  %279 = vst [vmem:[%s253 + $0x30] sm:%s245] %v278
                  %v280 = vld [vmem:[%s252 + $0x68] sm:%s245]
                  %281 = vst [vmem:[%s253 + $0x34] sm:%s245] %v280
                  %v282 = vld [vmem:[%s252 + $0x70] sm:%s245]
                  %283 = vst [vmem:[%s253 + $0x38] sm:%s245] %v282
                  %v284 = vld [vmem:[%s252 + $0x78] sm:%s245]
                  %285 = vst [vmem:[%s253 + $0x3c] sm:%s245] %v284
                $region55: #{qgnn_layer_v2_forward.4} parent=42 // loop_footer
                  %s251 = sadd.s32 1, %s247
                $region56: #{qgnn_layer_v2_forward.4} parent=42 // loop_footer_branch
                  %246 = sbr.rel target = $region52
                $region57: #{qgnn_layer_v2_forward.4} parent=42 // loop_exit
                  _
              $region43: #{qgnn_layer_v2_forward.4} parent=27 // pred_fallthru
                _
            $region28: #{qgnn_layer_v2_forward.4} parent=23 // pred_fallthru
              _
            // Predicated region
            $region29: #{qgnn_layer_v2_forward.4} parent=23 // pred_check
              _
            $region30: #{qgnn_layer_v2_forward.4} parent=23 // pred_check_branch
              %191 = sbr.rel (0) target = $region32
            $region31: #{qgnn_layer_v2_forward.4} parent=23 // pred_region
              %s193 = ssub.s32 16, 1
              loop: start=0, step=1, limit=1
              $region33: #{qgnn_layer_v2_forward.4} parent=31 // loop_pre_header
                _
              $region34: #{qgnn_layer_v2_forward.4} parent=31 // loop_header
                %s195 = sphi 0, %s199
                %p196 = scmp.ge.s32.totalorder %s195, 1
                %s200 = sphi %s185, %s185
                %s201 = sphi %s180, %s180
              $region35: #{qgnn_layer_v2_forward.4} parent=31 // loop_header_branch
                %198 = sbr.rel (%p196) target = $region39
              $region36: #{qgnn_layer_v2_forward.4} parent=31 // loop_body
                %v202 = vld [vmem:[%s200] sm:%s193]
                %203 = vst [vmem:[%s201] sm:%s193] %v202
                %v204 = vld [vmem:[%s200 + $0x8] sm:%s193]
                %205 = vst [vmem:[%s201 + $0x4] sm:%s193] %v204
                %v206 = vld [vmem:[%s200 + $0x10] sm:%s193]
                %207 = vst [vmem:[%s201 + $0x8] sm:%s193] %v206
                %v208 = vld [vmem:[%s200 + $0x18] sm:%s193]
                %209 = vst [vmem:[%s201 + $0xc] sm:%s193] %v208
                %v210 = vld [vmem:[%s200 + $0x20] sm:%s193]
                %211 = vst [vmem:[%s201 + $0x10] sm:%s193] %v210
                %v212 = vld [vmem:[%s200 + $0x28] sm:%s193]
                %213 = vst [vmem:[%s201 + $0x14] sm:%s193] %v212
                %v214 = vld [vmem:[%s200 + $0x30] sm:%s193]
                %215 = vst [vmem:[%s201 + $0x18] sm:%s193] %v214
                %v216 = vld [vmem:[%s200 + $0x38] sm:%s193]
                %217 = vst [vmem:[%s201 + $0x1c] sm:%s193] %v216
                %v218 = vld [vmem:[%s200 + $0x40] sm:%s193]
                %219 = vst [vmem:[%s201 + $0x20] sm:%s193] %v218
                %v220 = vld [vmem:[%s200 + $0x48] sm:%s193]
                %221 = vst [vmem:[%s201 + $0x24] sm:%s193] %v220
                %v222 = vld [vmem:[%s200 + $0x50] sm:%s193]
                %223 = vst [vmem:[%s201 + $0x28] sm:%s193] %v222
                %v224 = vld [vmem:[%s200 + $0x58] sm:%s193]
                %225 = vst [vmem:[%s201 + $0x2c] sm:%s193] %v224
                %v226 = vld [vmem:[%s200 + $0x60] sm:%s193]
                %227 = vst [vmem:[%s201 + $0x30] sm:%s193] %v226
                %v228 = vld [vmem:[%s200 + $0x68] sm:%s193]
                %229 = vst [vmem:[%s201 + $0x34] sm:%s193] %v228
                %v230 = vld [vmem:[%s200 + $0x70] sm:%s193]
                %231 = vst [vmem:[%s201 + $0x38] sm:%s193] %v230
                %v232 = vld [vmem:[%s200 + $0x78] sm:%s193]
                %233 = vst [vmem:[%s201 + $0x3c] sm:%s193] %v232
              $region37: #{qgnn_layer_v2_forward.4} parent=31 // loop_footer
                %s199 = sadd.s32 1, %s195
              $region38: #{qgnn_layer_v2_forward.4} parent=31 // loop_footer_branch
                %194 = sbr.rel target = $region34
              $region39: #{qgnn_layer_v2_forward.4} parent=31 // loop_exit
                _
            $region32: #{qgnn_layer_v2_forward.4} parent=23 // pred_fallthru
              _
          $region24: #{qgnn_layer_v2_forward.4} parent=19 // pred_fallthru
            _
          %286 = vnop
        $region20: #{qgnn_layer_v2_forward.4} parent=15 // pred_fallthru
          _
        // Predicated region
        $region58: #{qgnn_layer_v2_forward.4} parent=15 // pred_check
          %p287 = pneg %p71
        $region59: #{qgnn_layer_v2_forward.4} parent=15 // pred_check_branch
          %289 = sbr.rel (%p287) target = $region61
        $region60: #{qgnn_layer_v2_forward.4} parent=15 // pred_region
          %s290 = smul.u32 16, %s19
          %p291 = scmp.lt.s32.totalorder %s290, 31
          %s292 = scalar_select %p291, %s290, 31
          %s293 = smul.addr %s292, 4
          %s294 = scalar_lea.vmem %s1, %s293
          %s295 = smul.u32 16, %s19
        $region61: #{qgnn_layer_v2_forward.4} parent=15 // pred_fallthru
          _
      $region16: #{qgnn_layer_v2_forward.4} parent=5 // pred_fallthru
        _
      %p296 = scmp.le.s32.totalorder 1, %s11
      %p297 = scmp.lt.s32.totalorder %s11, 5
      %p298 = pnand %p296, %p297
      %p299 = pneg %p298
      // Predicated region
      $region62: #{qgnn_layer_v2_forward.4} parent=5 // pred_check
        _
      $region63: #{qgnn_layer_v2_forward.4} parent=5 // pred_check_branch
        %301 = sbr.rel (%p298) target = $region65
      $region64: #{qgnn_layer_v2_forward.4} parent=5 // pred_region
        %s302 = ssub.s32 %s11, 1
        %s303 = sand.u32 %s38, 1
        %s304 = sand.u32 %s38, 1
        %s305 = smul.addr %s304, 64
        %s306 = scalar_lea.vmem [#allocation2], %s305
        // Predicated region
        $region66: #{qgnn_layer_v2_forward.4} parent=64 // pred_check
          %p307 = pneg %p51
        $region67: #{qgnn_layer_v2_forward.4} parent=64 // pred_check_branch
          %309 = sbr.rel (%p307) target = $region69
        $region68: #{qgnn_layer_v2_forward.4} parent=64 // pred_region
          _
        $region69: #{qgnn_layer_v2_forward.4} parent=64 // pred_fallthru
          _
        %s310 = sand.u32 %s38, 1
        %s311 = sand.u32 %s38, 1
        %s312 = smul.addr %s311, 64
        %s313 = scalar_lea.vmem [#allocation2], %s312
        %p314 = pneg %p51
        %p315 = pneg %p48
        %s316 = smul.u32 16, %s21
        %p317 = scmp.lt.s32.totalorder %s316, 31
        %s318 = scalar_select %p317, %s316, 31
        %s319 = smul.addr %s318, 4
        %s320 = scalar_lea.vmem %s1, %s319
        %p321 = pneg %p77
        %p322 = pneg %p74
        %p323 = pneg %p103
        %p324 = pneg %p100
        %s325 = smul.u32 16, %s20
        %p326 = scmp.lt.s32.totalorder %s325, 31
        %s327 = scalar_select %p326, %s325, 31
        %s328 = smul.addr %s327, 8
        %s329 = scalar_lea.vmem %s2, %s328
        %p330 = pneg %p129
        %p331 = pneg %p126
        %p332 = scmp.lt.s32.totalorder %s20, 1
        %s333 = scalar_select %p332, %s20, 1
        %s334 = smul.addr %s333, 8
        %s335 = scalar_lea.vmem %s3, %s334
        %p336 = pneg %p155
        %p337 = pneg %p152
        %p338 = scmp.lt.s32.totalorder %s20, 1
        %s339 = scalar_select %p338, %s20, 1
        %s340 = smul.addr %s339, 8
        %s341 = scalar_lea.vmem %s4, %s340
        %s342 = smul.u32 16, %s20
        %s343 = smul.u32 16, %s21
        %p344 = scmp.lt.s32.totalorder %s343, 31
        %s345 = scalar_select %p344, %s343, 31
        %s346 = smul.addr %s345, 4
        %s347 = scalar_lea.vmem %s1, %s346
        %s348 = smul.u32 16, %s21
        %s349 = smul.u32 16, %s20
        %p350 = scmp.lt.s32.totalorder %s349, 31
        %s351 = scalar_select %p350, %s349, 31
        %s352 = smul.addr %s351, 8
        %s353 = scalar_lea.vmem %s2, %s352
        %s354 = smul.u32 16, %s20
        %p355 = scmp.lt.s32.totalorder %s20, 1
        %s356 = scalar_select %p355, %s20, 1
        %s357 = smul.addr %s356, 8
        %s358 = scalar_lea.vmem %s3, %s357
        %p359 = scmp.lt.s32.totalorder %s20, 1
        %s360 = scalar_select %p359, %s20, 1
        %s361 = smul.addr %s360, 8
        %s362 = scalar_lea.vmem %s4, %s361
        %p363 = scmp.eq.s32.totalorder %s21, 0
        // Predicated region
        $region70: #{qgnn_layer_v2_forward.4} parent=64 // pred_check
          %p364 = pneg %p363
        $region71: #{qgnn_layer_v2_forward.4} parent=64 // pred_check_branch
          %366 = sbr.rel (%p364) target = $region73
        $region72: #{qgnn_layer_v2_forward.4} parent=64 // pred_region
          %367 = vst [vmem:[%s353] sm:$0xff] 0.0
          %368 = vst [vmem:[%s353 + $0x8] sm:$0xff] 0.0
          %369 = vst [vmem:[%s353 + $0x10] sm:$0xff] 0.0
          %370 = vst [vmem:[%s353 + $0x18] sm:$0xff] 0.0
          %371 = vst [vmem:[%s353 + $0x20] sm:$0xff] 0.0
          %372 = vst [vmem:[%s353 + $0x28] sm:$0xff] 0.0
          %373 = vst [vmem:[%s353 + $0x30] sm:$0xff] 0.0
          %374 = vst [vmem:[%s353 + $0x38] sm:$0xff] 0.0
          %375 = vst [vmem:[%s353 + $0x40] sm:$0xff] 0.0
          %376 = vst [vmem:[%s353 + $0x48] sm:$0xff] 0.0
          %377 = vst [vmem:[%s353 + $0x50] sm:$0xff] 0.0
          %378 = vst [vmem:[%s353 + $0x58] sm:$0xff] 0.0
          %379 = vst [vmem:[%s353 + $0x60] sm:$0xff] 0.0
          %380 = vst [vmem:[%s353 + $0x68] sm:$0xff] 0.0
          %381 = vst [vmem:[%s353 + $0x70] sm:$0xff] 0.0
          %382 = vst [vmem:[%s353 + $0x78] sm:$0xff] 0.0
        $region73: #{qgnn_layer_v2_forward.4} parent=64 // pred_fallthru
          _
        %v383 = vld [vmem:[%s353] sm:$0xff]
        %v384 = vld [vmem:[%s353 + $0x8] sm:$0xff]
        %v385 = vld [vmem:[%s353 + $0x10] sm:$0xff]
        %v386 = vld [vmem:[%s353 + $0x18] sm:$0xff]
        %v387 = vld [vmem:[%s353 + $0x20] sm:$0xff]
        %v388 = vld [vmem:[%s353 + $0x28] sm:$0xff]
        %v389 = vld [vmem:[%s353 + $0x30] sm:$0xff]
        %v390 = vld [vmem:[%s353 + $0x38] sm:$0xff]
        %v391 = vld [vmem:[%s353 + $0x40] sm:$0xff]
        %v392 = vld [vmem:[%s353 + $0x48] sm:$0xff]
        %v393 = vld [vmem:[%s353 + $0x50] sm:$0xff]
        %v394 = vld [vmem:[%s353 + $0x58] sm:$0xff]
        %v395 = vld [vmem:[%s353 + $0x60] sm:$0xff]
        %v396 = vld [vmem:[%s353 + $0x68] sm:$0xff]
        %v397 = vld [vmem:[%s353 + $0x70] sm:$0xff]
        %v398 = vld [vmem:[%s353 + $0x78] sm:$0xff]
        %v399 = vld [vmem:[%s306] sm:$0xf]
        %v400 = vld [vmem:[%s306 + $0x4] sm:$0xf]
        %v401 = vld [vmem:[%s306 + $0x8] sm:$0xf]
        %v402 = vld [vmem:[%s306 + $0xc] sm:$0xf]
        %v403 = vld [vmem:[%s306 + $0x10] sm:$0xf]
        %v404 = vld [vmem:[%s306 + $0x14] sm:$0xf]
        %v405 = vld [vmem:[%s306 + $0x18] sm:$0xf]
        %v406 = vld [vmem:[%s306 + $0x1c] sm:$0xf]
        %v407 = vld [vmem:[%s306 + $0x20] sm:$0xf]
        %v408 = vld [vmem:[%s306 + $0x24] sm:$0xf]
        %v409 = vld [vmem:[%s306 + $0x28] sm:$0xf]
        %v410 = vld [vmem:[%s306 + $0x2c] sm:$0xf]
        %v411 = vld [vmem:[%s306 + $0x30] sm:$0xf]
        %v412 = vld [vmem:[%s306 + $0x34] sm:$0xf]
        %v413 = vld [vmem:[%s306 + $0x38] sm:$0xf]
        %v414 = vld [vmem:[%s306 + $0x3c] sm:$0xf]
        %v415 = vld [vmem:[%s347] sm:$0xf]
        %v416 = vld [vmem:[%s347 + $0x4] sm:$0xf]
        %v417 = vld [vmem:[%s347 + $0x8] sm:$0xf]
        %v418 = vld [vmem:[%s347 + $0xc] sm:$0xf]
        %v419 = vld [vmem:[%s347 + $0x10] sm:$0xf]
        %v420 = vld [vmem:[%s347 + $0x14] sm:$0xf]
        %v421 = vld [vmem:[%s347 + $0x18] sm:$0xf]
        %v422 = vld [vmem:[%s347 + $0x1c] sm:$0xf]
        %v423 = vld [vmem:[%s347 + $0x20] sm:$0xf]
        %v424 = vld [vmem:[%s347 + $0x24] sm:$0xf]
        %v425 = vld [vmem:[%s347 + $0x28] sm:$0xf]
        %v426 = vld [vmem:[%s347 + $0x2c] sm:$0xf]
        %v427 = vld [vmem:[%s347 + $0x30] sm:$0xf]
        %v428 = vld [vmem:[%s347 + $0x34] sm:$0xf]
        %v429 = vld [vmem:[%s347 + $0x38] sm:$0xf]
        %v430 = vld [vmem:[%s347 + $0x3c] sm:$0xf]
        %v447 = vunpack.c.l.b16 %v399
        %v448 = vunpack.c.l.b16 %v400
        %v449 = vunpack.c.l.b16 %v401
        %v450 = vunpack.c.l.b16 %v402
        %v451 = vunpack.c.l.b16 %v403
        %v452 = vunpack.c.l.b16 %v404
        %v453 = vunpack.c.l.b16 %v405
        %v454 = vunpack.c.l.b16 %v406
        %v455 = vunpack.c.l.b16 %v407
        %v456 = vunpack.c.l.b16 %v408
        %v457 = vunpack.c.l.b16 %v409
        %v458 = vunpack.c.l.b16 %v410
        %v459 = vunpack.c.l.b16 %v411
        %v460 = vunpack.c.l.b16 %v412
        %v461 = vunpack.c.l.b16 %v413
        %v462 = vunpack.c.l.b16 %v414
        %v463 = vpack.c.b16 %v448, %v447
        %v464 = vpack.c.b16 %v450, %v449
        %v465 = vpack.c.b16 %v452, %v451
        %v466 = vpack.c.b16 %v454, %v453
        %v467 = vpack.c.b16 %v456, %v455
        %v468 = vpack.c.b16 %v458, %v457
        %v469 = vpack.c.b16 %v460, %v459
        %v470 = vpack.c.b16 %v462, %v461
        %v495 = vunpack.c.l.b16 %v415
        %v496 = vunpack.c.l.b16 %v416
        %v497 = vunpack.c.l.b16 %v417
        %v498 = vunpack.c.l.b16 %v418
        %v499 = vunpack.c.l.b16 %v419
        %v500 = vunpack.c.l.b16 %v420
        %v501 = vunpack.c.l.b16 %v421
        %v502 = vunpack.c.l.b16 %v422
        %v503 = vunpack.c.l.b16 %v423
        %v504 = vunpack.c.l.b16 %v424
        %v505 = vunpack.c.l.b16 %v425
        %v506 = vunpack.c.l.b16 %v426
        %v507 = vunpack.c.l.b16 %v427
        %v508 = vunpack.c.l.b16 %v428
        %v509 = vunpack.c.l.b16 %v429
        %v510 = vunpack.c.l.b16 %v430
        %v511 = vpack.c.b16 %v496, %v495
        %v512 = vpack.c.b16 %v498, %v497
        %v513 = vpack.c.b16 %v500, %v499
        %v514 = vpack.c.b16 %v502, %v501
        %v515 = vpack.c.b16 %v504, %v503
        %v516 = vpack.c.b16 %v506, %v505
        %v517 = vpack.c.b16 %v508, %v507
        %v518 = vpack.c.b16 %v510, %v509
        %527 = vmatpush.bf16.msra.mxu0 %v518
        %528 = vmatpush.bf16.msra.mxu0 %v517
        %529 = vmatpush.bf16.msra.mxu0 %v516
        %530 = vmatpush.bf16.msra.mxu0 %v515
        %531 = vmatpush.bf16.msra.mxu0 %v514
        %532 = vmatpush.bf16.msra.mxu0 %v513
        %533 = vmatpush.bf16.msra.mxu0 %v512
        %534 = vmatpush.bf16.msra.mxu0 %v511
        %535 = vmatmul.bf16.gmra.mxu0 %v463
        %v536 = vpop.f32.mrf.mxu0
        %v537 = vadd.f32 0.0, %v536
        %v538 = vpop.f32.mrf.mxu0
        %v539 = vadd.f32 0.0, %v538
        %540 = vmatmul.bf16.gmra.mxu0 %v464
        %v541 = vpop.f32.mrf.mxu0
        %v542 = vadd.f32 0.0, %v541
        %v543 = vpop.f32.mrf.mxu0
        %v544 = vadd.f32 0.0, %v543
        %545 = vmatmul.bf16.gmra.mxu0 %v465
        %v546 = vpop.f32.mrf.mxu0
        %v547 = vadd.f32 0.0, %v546
        %v548 = vpop.f32.mrf.mxu0
        %v549 = vadd.f32 0.0, %v548
        %550 = vmatmul.bf16.gmra.mxu0 %v466
        %v551 = vpop.f32.mrf.mxu0
        %v552 = vadd.f32 0.0, %v551
        %v553 = vpop.f32.mrf.mxu0
        %v554 = vadd.f32 0.0, %v553
        %555 = vmatmul.bf16.gmra.mxu0 %v467
        %v556 = vpop.f32.mrf.mxu0
        %v557 = vadd.f32 0.0, %v556
        %v558 = vpop.f32.mrf.mxu0
        %v559 = vadd.f32 0.0, %v558
        %560 = vmatmul.bf16.gmra.mxu0 %v468
        %v561 = vpop.f32.mrf.mxu0
        %v562 = vadd.f32 0.0, %v561
        %v563 = vpop.f32.mrf.mxu0
        %v564 = vadd.f32 0.0, %v563
        %565 = vmatmul.bf16.gmra.mxu0 %v469
        %v566 = vpop.f32.mrf.mxu0
        %v567 = vadd.f32 0.0, %v566
        %v568 = vpop.f32.mrf.mxu0
        %v569 = vadd.f32 0.0, %v568
        %570 = vmatmul.bf16.gmra.mxu0 %v470
        %v571 = vpop.f32.mrf.mxu0
        %v572 = vadd.f32 0.0, %v571
        %v573 = vpop.f32.mrf.mxu0
        %v574 = vadd.f32 0.0, %v573
        %575 = vdwg.mxu0
        %v576 = vadd.f32 %v383, %v537
        %v577 = vadd.f32 %v384, %v539
        %v578 = vadd.f32 %v385, %v542
        %v579 = vadd.f32 %v386, %v544
        %v580 = vadd.f32 %v387, %v547
        %v581 = vadd.f32 %v388, %v549
        %v582 = vadd.f32 %v389, %v552
        %v583 = vadd.f32 %v390, %v554
        %v584 = vadd.f32 %v391, %v557
        %v585 = vadd.f32 %v392, %v559
        %v586 = vadd.f32 %v393, %v562
        %v587 = vadd.f32 %v394, %v564
        %v588 = vadd.f32 %v395, %v567
        %v589 = vadd.f32 %v396, %v569
        %v590 = vadd.f32 %v397, %v572
        %v591 = vadd.f32 %v398, %v574
        %592 = vst [vmem:[%s353] sm:$0xff] %v576
        %593 = vst [vmem:[%s353 + $0x8] sm:$0xff] %v577
        %594 = vst [vmem:[%s353 + $0x10] sm:$0xff] %v578
        %595 = vst [vmem:[%s353 + $0x18] sm:$0xff] %v579
        %596 = vst [vmem:[%s353 + $0x20] sm:$0xff] %v580
        %597 = vst [vmem:[%s353 + $0x28] sm:$0xff] %v581
        %598 = vst [vmem:[%s353 + $0x30] sm:$0xff] %v582
        %599 = vst [vmem:[%s353 + $0x38] sm:$0xff] %v583
        %600 = vst [vmem:[%s353 + $0x40] sm:$0xff] %v584
        %601 = vst [vmem:[%s353 + $0x48] sm:$0xff] %v585
        %602 = vst [vmem:[%s353 + $0x50] sm:$0xff] %v586
        %603 = vst [vmem:[%s353 + $0x58] sm:$0xff] %v587
        %604 = vst [vmem:[%s353 + $0x60] sm:$0xff] %v588
        %605 = vst [vmem:[%s353 + $0x68] sm:$0xff] %v589
        %606 = vst [vmem:[%s353 + $0x70] sm:$0xff] %v590
        %607 = vst [vmem:[%s353 + $0x78] sm:$0xff] %v591
        %p608 = scmp.eq.s32.totalorder %s21, 1
        // Predicated region
        $region74: #{qgnn_layer_v2_forward.4} parent=64 // pred_check
          %p609 = pneg %p608
        $region75: #{qgnn_layer_v2_forward.4} parent=64 // pred_check_branch
          %611 = sbr.rel (%p609) target = $region77
        $region76: #{qgnn_layer_v2_forward.4} parent=64 // pred_region
          %v612 = vld [vmem:[%s353] sm:$0xff]
          %v613 = vld [vmem:[%s353 + $0x8] sm:$0xff]
          %v614 = vld [vmem:[%s353 + $0x10] sm:$0xff]
          %v615 = vld [vmem:[%s353 + $0x18] sm:$0xff]
          %v616 = vld [vmem:[%s353 + $0x20] sm:$0xff]
          %v617 = vld [vmem:[%s353 + $0x28] sm:$0xff]
          %v618 = vld [vmem:[%s353 + $0x30] sm:$0xff]
          %v619 = vld [vmem:[%s353 + $0x38] sm:$0xff]
          %v620 = vld [vmem:[%s353 + $0x40] sm:$0xff]
          %v621 = vld [vmem:[%s353 + $0x48] sm:$0xff]
          %v622 = vld [vmem:[%s353 + $0x50] sm:$0xff]
          %v623 = vld [vmem:[%s353 + $0x58] sm:$0xff]
          %v624 = vld [vmem:[%s353 + $0x60] sm:$0xff]
          %v625 = vld [vmem:[%s353 + $0x68] sm:$0xff]
          %v626 = vld [vmem:[%s353 + $0x70] sm:$0xff]
          %v627 = vld [vmem:[%s353 + $0x78] sm:$0xff]
          %v628 = vadd.f32 %v612, %v613
          %v629 = vadd.f32 %v628, %v614
          %v630 = vadd.f32 %v629, %v615
          %v631 = vadd.f32 %v630, %v616
          %v632 = vadd.f32 %v631, %v617
          %v633 = vadd.f32 %v632, %v618
          %v634 = vadd.f32 %v633, %v619
          %v635 = vadd.f32 %v634, %v620
          %v636 = vadd.f32 %v635, %v621
          %v637 = vadd.f32 %v636, %v622
          %v638 = vadd.f32 %v637, %v623
          %v639 = vadd.f32 %v638, %v624
          %v640 = vadd.f32 %v639, %v625
          %v641 = vadd.f32 %v640, %v626
          %v642 = vadd.f32 %v641, %v627
          %v643 = vrot.slane %v642, 4
          %v644 = vadd.f32 %v642, %v643
          %v645 = vrot.slane %v644, 2
          %v646 = vadd.f32 %v644, %v645
          %v647 = vrot.slane %v646, 1
          %v648 = vadd.f32 %v646, %v647
          %v649 = vmul.f32 %v612, %v612
          %v650 = vmul.f32 %v613, %v613
          %v651 = vmul.f32 %v614, %v614
          %v652 = vmul.f32 %v615, %v615
          %v653 = vmul.f32 %v616, %v616
          %v654 = vmul.f32 %v617, %v617
          %v655 = vmul.f32 %v618, %v618
          %v656 = vmul.f32 %v619, %v619
          %v657 = vmul.f32 %v620, %v620
          %v658 = vmul.f32 %v621, %v621
          %v659 = vmul.f32 %v622, %v622
          %v660 = vmul.f32 %v623, %v623
          %v661 = vmul.f32 %v624, %v624
          %v662 = vmul.f32 %v625, %v625
          %v663 = vmul.f32 %v626, %v626
          %v664 = vmul.f32 %v627, %v627
          %v665 = vadd.f32 %v649, %v650
          %v666 = vadd.f32 %v665, %v651
          %v667 = vadd.f32 %v666, %v652
          %v668 = vadd.f32 %v667, %v653
          %v669 = vadd.f32 %v668, %v654
          %v670 = vadd.f32 %v669, %v655
          %v671 = vadd.f32 %v670, %v656
          %v672 = vadd.f32 %v671, %v657
          %v673 = vadd.f32 %v672, %v658
          %v674 = vadd.f32 %v673, %v659
          %v675 = vadd.f32 %v674, %v660
          %v676 = vadd.f32 %v675, %v661
          %v677 = vadd.f32 %v676, %v662
          %v678 = vadd.f32 %v677, %v663
          %v679 = vadd.f32 %v678, %v664
          %v680 = vrot.slane %v679, 4
          %v681 = vadd.f32 %v679, %v680
          %v682 = vrot.slane %v681, 2
          %v683 = vadd.f32 %v681, %v682
          %v684 = vrot.slane %v683, 1
          %v685 = vadd.f32 %v683, %v684
          %686 = vst [vmem:[%s358] sm:$0xff] %v648
          %687 = vst [vmem:[%s362] sm:$0xff] %v685
        $region77: #{qgnn_layer_v2_forward.4} parent=64 // pred_fallthru
          _
        %s688 = smul.u32 16, %s20
        %p689 = scmp.lt.s32.totalorder %s688, 31
        %s690 = scalar_select %p689, %s688, 31
        %s691 = smul.addr %s690, 8
        %s692 = scalar_lea.vmem %s2, %s691
        %p693 = scmp.lt.s32.totalorder %s20, 1
        %s694 = scalar_select %p693, %s20, 1
        %s695 = smul.addr %s694, 8
        %s696 = scalar_lea.vmem %s3, %s695
        %p697 = scmp.lt.s32.totalorder %s20, 1
        %s698 = scalar_select %p697, %s20, 1
        %s699 = smul.addr %s698, 8
        %s700 = scalar_lea.vmem %s4, %s699
        // Predicated region
        $region78: #{qgnn_layer_v2_forward.4} parent=64 // pred_check
          %p701 = pneg %p100
        $region79: #{qgnn_layer_v2_forward.4} parent=64 // pred_check_branch
          %703 = sbr.rel (%p701) target = $region81
        $region80: #{qgnn_layer_v2_forward.4} parent=64 // pred_region
          %s704 = smul.u32 16, %s20
        $region81: #{qgnn_layer_v2_forward.4} parent=64 // pred_fallthru
          _
        // Predicated region
        $region82: #{qgnn_layer_v2_forward.4} parent=64 // pred_check
          %p705 = pneg %p126
        $region83: #{qgnn_layer_v2_forward.4} parent=64 // pred_check_branch
          %707 = sbr.rel (%p705) target = $region85
        $region84: #{qgnn_layer_v2_forward.4} parent=64 // pred_region
          _
        $region85: #{qgnn_layer_v2_forward.4} parent=64 // pred_fallthru
          _
        // Predicated region
        $region86: #{qgnn_layer_v2_forward.4} parent=64 // pred_check
          %p708 = pneg %p152
        $region87: #{qgnn_layer_v2_forward.4} parent=64 // pred_check_branch
          %710 = sbr.rel (%p708) target = $region89
        $region88: #{qgnn_layer_v2_forward.4} parent=64 // pred_region
          _
        $region89: #{qgnn_layer_v2_forward.4} parent=64 // pred_fallthru
          _
      $region65: #{qgnn_layer_v2_forward.4} parent=5 // pred_fallthru
        _
      %p711 = scmp.le.s32.totalorder 2, %s11
      // Predicated region
      $region90: #{qgnn_layer_v2_forward.4} parent=5 // pred_check
        %p712 = pneg %p711
      $region91: #{qgnn_layer_v2_forward.4} parent=5 // pred_check_branch
        %714 = sbr.rel (%p712) target = $region93
      $region92: #{qgnn_layer_v2_forward.4} parent=5 // pred_region
        %s715 = ssub.s32 %s11, 2
        // Predicated region
        $region94: #{qgnn_layer_v2_forward.4} parent=92 // pred_check
          %p716 = pneg %p106
        $region95: #{qgnn_layer_v2_forward.4} parent=92 // pred_check_branch
          %718 = sbr.rel (%p716) target = $region97
        $region96: #{qgnn_layer_v2_forward.4} parent=92 // pred_region
          %s719 = smul.u32 16, %s22
          %p720 = scmp.lt.s32.totalorder %s719, 31
          %s721 = scalar_select %p720, %s719, 31
          %s722 = smul.addr %s721, 8
          %s723 = scalar_lea.vmem %s2, %s722
        $region97: #{qgnn_layer_v2_forward.4} parent=92 // pred_fallthru
          _
        // Predicated region
        $region98: #{qgnn_layer_v2_forward.4} parent=92 // pred_check
          %p724 = pneg %p132
        $region99: #{qgnn_layer_v2_forward.4} parent=92 // pred_check_branch
          %726 = sbr.rel (%p724) target = $region101
        $region100: #{qgnn_layer_v2_forward.4} parent=92 // pred_region
          %p727 = scmp.lt.s32.totalorder %s22, 1
          %s728 = scalar_select %p727, %s22, 1
          %s729 = smul.addr %s728, 8
          %s730 = scalar_lea.vmem %s3, %s729
        $region101: #{qgnn_layer_v2_forward.4} parent=92 // pred_fallthru
          _
        // Predicated region
        $region102: #{qgnn_layer_v2_forward.4} parent=92 // pred_check
          %p731 = pneg %p158
        $region103: #{qgnn_layer_v2_forward.4} parent=92 // pred_check_branch
          %733 = sbr.rel (%p731) target = $region105
        $region104: #{qgnn_layer_v2_forward.4} parent=92 // pred_region
          %p734 = scmp.lt.s32.totalorder %s22, 1
          %s735 = scalar_select %p734, %s22, 1
          %s736 = smul.addr %s735, 8
          %s737 = scalar_lea.vmem %s4, %s736
        $region105: #{qgnn_layer_v2_forward.4} parent=92 // pred_fallthru
          _
      $region93: #{qgnn_layer_v2_forward.4} parent=5 // pred_fallthru
        _
    $region6: #{qgnn_layer_v2_forward.4} parent=1 // loop_footer
      %s15 = sadd.s32 1, %s11
    $region7: #{qgnn_layer_v2_forward.4} parent=1 // loop_footer_branch
      %10 = sbr.rel target = $region3
    $region8: #{qgnn_layer_v2_forward.4} parent=1 // loop_exit
      _

</llo_original>
